<compile_context>
chip_gen: v6e
topology: v6e:2x2x1
jax: 0.10.0
libtpu: 0.0.40
codegen_flags: <defaults>
</compile_context>

<pallas_src>
import functools

import jax
import jax.numpy as jnp
from jax.experimental import pallas as pl
from jax.experimental.pallas import tpu as pltpu


def _round_up(x, mult):
    return ((x + mult - 1) // mult) * mult


def _dotgat_kernel(x_ref, w_ref, out_ref, *, nm, k):
    # x_ref:   (TR, input_dim)            rows = flattened (batch * agents)
    # w_ref:   (input_dim, k * 2 * nm)    rank-major expanded [U | V] slabs
    # out_ref: (TR, nm)
    x = x_ref[...]
    two_nm = 2 * nm

    # Rank 0 initialises the accumulator (saves a zero-fill + add pass).
    y = jnp.dot(x, w_ref[:, 0:two_nm], preferred_element_type=jnp.float32)
    acc = y[:, :nm] * y[:, nm:]
    # k == maxrank is small (8), so this loop fully unrolls.
    for c in range(1, k):
        y = jnp.dot(
            x,
            w_ref[:, c * two_nm:(c + 1) * two_nm],
            preferred_element_type=jnp.float32,
        )
        acc = acc + y[:, :nm] * y[:, nm:]
    # acc is lane-dense (nm = 256 lanes): full-width vector stores.
    out_ref[...] = acc.astype(out_ref.dtype)


def prepare_dotgat_weights(w_in, w_u, w_v, *, n, m, maxrank):
    """Fuse + rank-expand the module weights.  Call once per weight set.

    w_in: [input_dim, hidden]   agent_input_proj weight, stored (in, out)
    w_u:  [hidden, n*maxrank]   U_proj weight, stored (in, out)
    w_v:  [hidden, n*maxrank]   V_proj weight, stored (in, out)
    Returns w_all: [input_dim, maxrank * 2 * n * m] float32.
    """
    assert n == m, "module's V_proj + reshape implicitly requires n == m"
    in_dim, hidden = w_in.shape
    k = maxrank
    assert w_u.shape == (hidden, n * k)
    assert w_v.shape == (hidden, n * k)

    f32 = jnp.float32
    # Exact fusion of agent_input_proj (no bias / nonlinearity in between);
    # 1/maxrank folded into the V side.
    w_xu = jnp.dot(w_in.astype(f32), w_u.astype(f32))              # (in_dim, n*k)
    w_xv = jnp.dot(w_in.astype(f32), w_v.astype(f32)) / float(k)   # (in_dim, m*k)
    # PyTorch .view(B, A, n, k): output column o = i*k + c  <->  (i, c).
    w_xu = w_xu.reshape(in_dim, n, k).transpose(0, 2, 1)           # [:, c, i]
    w_xv = w_xv.reshape(in_dim, m, k).transpose(0, 2, 1)           # [:, c, j]
    # Rank-expanded slabs so out[:, i*m+j] = sum_c (x@wu[:,c,i]) * (x@wv[:,c,j]):
    #   U columns repeated m times, V columns tiled n times.
    wu_exp = jnp.broadcast_to(
        w_xu[:, :, :, None], (in_dim, k, n, m)).reshape(in_dim, k, n * m)
    wv_exp = jnp.broadcast_to(
        w_xv[:, :, None, :], (in_dim, k, n, m)).reshape(in_dim, k, n * m)
    # [U | V] per rank, flattened rank-major along lanes.
    w_all = jnp.concatenate([wu_exp, wv_exp], axis=-1)             # (in_dim, k, 2*n*m)
    return w_all.reshape(in_dim, k * 2 * n * m)


def distributed_dot_gat_forward(x, w_all, *, n, m, maxrank, tile_rows=1024):
    """Forward pass given pre-fused weights from prepare_dotgat_weights."""
    B, A, in_dim = x.shape
    nm = n * m
    k = maxrank
    assert w_all.shape == (in_dim, k * 2 * nm)

    R = B * A
    # Single grid step whenever all rows fit in one tile (the grid is a serial
    # loop on v5e/v6e, so splitting tiny inputs is pure overhead); otherwise
    # large row tiles amortise per-step pipeline overhead.  Raising tile_rows
    # beyond ~2-4K rows also needs vmem_limit_bytes bumped in CompilerParams.
    tile_rows = max(8, min(int(tile_rows), _round_up(R, 8)))
    grid = pl.cdiv(R, tile_rows)
    r_pad = grid * tile_rows

    x2 = x.reshape(R, in_dim).astype(jnp.float32)
    if r_pad != R:
        x2 = jnp.pad(x2, ((0, r_pad - R), (0, 0)))  # zero rows -> zero outputs

    kernel = functools.partial(_dotgat_kernel, nm=nm, k=k)
    out = pl.pallas_call(
        kernel,
        out_shape=jax.ShapeDtypeStruct((r_pad, nm), jnp.float32),
        grid_spec=pltpu.PrefetchScalarGridSpec(
            num_scalar_prefetch=0,
            grid=(grid,),
            in_specs=[
                pl.BlockSpec((tile_rows, in_dim), lambda r: (r, 0)),
                pl.BlockSpec((in_dim, k * 2 * nm), lambda r: (0, 0)),
            ],
            out_specs=pl.BlockSpec((tile_rows, nm), lambda r: (r, 0)),
        ),
        compiler_params=pltpu.CompilerParams(
            dimension_semantics=("parallel",),
        ),
    )(x2, w_all)

    if r_pad != R:
        out = out[:R]
    return out.reshape(B, A, nm)


def distributed_dot_gat(x, w_in, w_u, w_v, *, n, m, maxrank, tile_rows=1024):
    """Convenience wrapper (weight prep should be hoisted/cached in practice)."""
    w_all = prepare_dotgat_weights(w_in, w_u, w_v, n=n, m=m, maxrank=maxrank)
    return distributed_dot_gat_forward(
        x, w_all, n=n, m=m, maxrank=maxrank, tile_rows=tile_rows)


def _reference(x, w_in, w_u, w_v, *, n, m, maxrank):
    # Pure-JAX reference matching the PyTorch forward (unfused weights).
    h = jnp.einsum("bai,ih->bah", x, w_in)
    B, A, _ = h.shape
    U = jnp.einsum("bah,ho->bao", h, w_u).reshape(B, A, n, maxrank)
    V = jnp.einsum("bah,ho->bao", h, w_v).reshape(B, A, m, maxrank)
    H = jnp.einsum("bank,bamk->banm", U, V) / maxrank
    return H.reshape(B, A, n * m)


if __name__ == "__main__":
    # Module hyperparameters (small, consistent with the forward pass).
    input_dim = 16
    hidden_dim = 32
    n = 16
    m = 16             # module's V_proj reshape requires n == m
    num_agents = 8
    num_heads = 4      # unused in forward (GAT heads are commented out in source)
    dropout = 0.1      # unused in forward
    message_steps = 3  # unused in forward (message passing is commented out)
    maxrank = min(n // 2, m // 2)  # = 8
    B = 2

    key = jax.random.PRNGKey(0)
    kx, k1, k2, k3 = jax.random.split(key, 4)

    # Deterministic PyTorch-Linear-style init: U(-1/sqrt(fan_in), 1/sqrt(fan_in)),
    # stored transposed (in_features, out_features) so y = x @ W.
    def linear_weight(kk, fan_in, fan_out):
        bound = 1.0 / (fan_in ** 0.5)
        return jax.random.uniform(
            kk, (fan_in, fan_out), dtype=jnp.float32, minval=-bound, maxval=bound
        )

    w_in = linear_weight(k1, input_dim, hidden_dim)     # agent_input_proj
    w_u = linear_weight(k2, hidden_dim, n * maxrank)    # U_proj
    w_v = linear_weight(k3, hidden_dim, n * maxrank)    # V_proj

    x = jax.random.normal(kx, (B, num_agents, input_dim), dtype=jnp.float32)

    # Weight fusion / rank expansion is hoisted: computed once per weight set,
    # not per forward call.
    w_all = jax.block_until_ready(
        prepare_dotgat_weights(w_in, w_u, w_v, n=n, m=m, maxrank=maxrank))

    out = distributed_dot_gat_forward(x, w_all, n=n, m=m, maxrank=maxrank)
    out = jax.block_until_ready(out)

    ref = _reference(x, w_in, w_u, w_v, n=n, m=m, maxrank=maxrank)
    assert out.shape == (B, num_agents, n * m)
    assert jnp.allclose(out, ref, atol=1e-4, rtol=1e-4)

    print("KERNEL_OK")
</pallas_src>

<mosaic_0001>
module attributes {stable_mosaic.version = 11 : i64} {
  func.func @_dotgat_kernel(%arg0: i32, %arg1: memref<16x16xf32, #tpu.memory_space<vmem>>, %arg2: memref<16x4096xf32, #tpu.memory_space<vmem>>, %arg3: memref<16x256xf32, #tpu.memory_space<vmem>>) attributes {dimension_semantics = [#tpu.dimension_semantics<parallel>], iteration_bounds = array<i64: 1>, scalar_prefetch = 0 : i64, scratch_operands = 0 : i64, tpu.core_type = #tpu.core_type<tc>, window_params = [{transform_indices = @transform_0, window_bounds = array<i64: 16, 16>}, {pipeline_mode = #tpu.pipeline_mode<synchronous>, transform_indices = @transform_1, window_bounds = array<i64: 16, 4096>}, {transform_indices = @transform_2, window_bounds = array<i64: 16, 256>}]} {
    %c0 = arith.constant 0 : index
    %c0_0 = arith.constant 0 : index
    %0 = vector.load %arg1[%c0, %c0_0] : memref<16x16xf32, #tpu.memory_space<vmem>>, vector<16x16xf32>
    %c0_1 = arith.constant 0 : index
    %c0_2 = arith.constant 0 : index
    %1 = vector.load %arg2[%c0_1, %c0_2] : memref<16x4096xf32, #tpu.memory_space<vmem>>, vector<16x512xf32>
    %cst = arith.constant dense<0.000000e+00> : vector<16x512xf32>
    %2 = tpu.matmul %0, %1, %cst {dimension_numbers = #tpu.dot_dimension_numbers<[1], [0], [0], [1], [0, 0, 1, 1], [], []>} : vector<16x16xf32>, vector<16x512xf32>, vector<16x512xf32> -> vector<16x512xf32>
    %3 = vector.extract_strided_slice %2 {offsets = [0, 0], sizes = [16, 256], strides = [1, 1]} : vector<16x512xf32> to vector<16x256xf32>
    %4 = vector.extract_strided_slice %2 {offsets = [0, 256], sizes = [16, 256], strides = [1, 1]} : vector<16x512xf32> to vector<16x256xf32>
    %5 = arith.mulf %3, %4 : vector<16x256xf32>
    %c0_3 = arith.constant 0 : index
    %c512 = arith.constant 512 : index
    %6 = vector.load %arg2[%c0_3, %c512] : memref<16x4096xf32, #tpu.memory_space<vmem>>, vector<16x512xf32>
    %cst_4 = arith.constant dense<0.000000e+00> : vector<16x512xf32>
    %7 = tpu.matmul %0, %6, %cst_4 {dimension_numbers = #tpu.dot_dimension_numbers<[1], [0], [0], [1], [0, 0, 1, 1], [], []>} : vector<16x16xf32>, vector<16x512xf32>, vector<16x512xf32> -> vector<16x512xf32>
    %8 = vector.extract_strided_slice %7 {offsets = [0, 0], sizes = [16, 256], strides = [1, 1]} : vector<16x512xf32> to vector<16x256xf32>
    %9 = vector.extract_strided_slice %7 {offsets = [0, 256], sizes = [16, 256], strides = [1, 1]} : vector<16x512xf32> to vector<16x256xf32>
    %10 = arith.mulf %8, %9 : vector<16x256xf32>
    %11 = arith.addf %5, %10 : vector<16x256xf32>
    %c0_5 = arith.constant 0 : index
    %c1024 = arith.constant 1024 : index
    %12 = vector.load %arg2[%c0_5, %c1024] : memref<16x4096xf32, #tpu.memory_space<vmem>>, vector<16x512xf32>
    %cst_6 = arith.constant dense<0.000000e+00> : vector<16x512xf32>
    %13 = tpu.matmul %0, %12, %cst_6 {dimension_numbers = #tpu.dot_dimension_numbers<[1], [0], [0], [1], [0, 0, 1, 1], [], []>} : vector<16x16xf32>, vector<16x512xf32>, vector<16x512xf32> -> vector<16x512xf32>
    %14 = vector.extract_strided_slice %13 {offsets = [0, 0], sizes = [16, 256], strides = [1, 1]} : vector<16x512xf32> to vector<16x256xf32>
    %15 = vector.extract_strided_slice %13 {offsets = [0, 256], sizes = [16, 256], strides = [1, 1]} : vector<16x512xf32> to vector<16x256xf32>
    %16 = arith.mulf %14, %15 : vector<16x256xf32>
    %17 = arith.addf %11, %16 : vector<16x256xf32>
    %c0_7 = arith.constant 0 : index
    %c1536 = arith.constant 1536 : index
    %18 = vector.load %arg2[%c0_7, %c1536] : memref<16x4096xf32, #tpu.memory_space<vmem>>, vector<16x512xf32>
    %cst_8 = arith.constant dense<0.000000e+00> : vector<16x512xf32>
    %19 = tpu.matmul %0, %18, %cst_8 {dimension_numbers = #tpu.dot_dimension_numbers<[1], [0], [0], [1], [0, 0, 1, 1], [], []>} : vector<16x16xf32>, vector<16x512xf32>, vector<16x512xf32> -> vector<16x512xf32>
    %20 = vector.extract_strided_slice %19 {offsets = [0, 0], sizes = [16, 256], strides = [1, 1]} : vector<16x512xf32> to vector<16x256xf32>
    %21 = vector.extract_strided_slice %19 {offsets = [0, 256], sizes = [16, 256], strides = [1, 1]} : vector<16x512xf32> to vector<16x256xf32>
    %22 = arith.mulf %20, %21 : vector<16x256xf32>
    %23 = arith.addf %17, %22 : vector<16x256xf32>
    %c0_9 = arith.constant 0 : index
    %c2048 = arith.constant 2048 : index
    %24 = vector.load %arg2[%c0_9, %c2048] : memref<16x4096xf32, #tpu.memory_space<vmem>>, vector<16x512xf32>
    %cst_10 = arith.constant dense<0.000000e+00> : vector<16x512xf32>
    %25 = tpu.matmul %0, %24, %cst_10 {dimension_numbers = #tpu.dot_dimension_numbers<[1], [0], [0], [1], [0, 0, 1, 1], [], []>} : vector<16x16xf32>, vector<16x512xf32>, vector<16x512xf32> -> vector<16x512xf32>
    %26 = vector.extract_strided_slice %25 {offsets = [0, 0], sizes = [16, 256], strides = [1, 1]} : vector<16x512xf32> to vector<16x256xf32>
    %27 = vector.extract_strided_slice %25 {offsets = [0, 256], sizes = [16, 256], strides = [1, 1]} : vector<16x512xf32> to vector<16x256xf32>
    %28 = arith.mulf %26, %27 : vector<16x256xf32>
    %29 = arith.addf %23, %28 : vector<16x256xf32>
    %c0_11 = arith.constant 0 : index
    %c2560 = arith.constant 2560 : index
    %30 = vector.load %arg2[%c0_11, %c2560] : memref<16x4096xf32, #tpu.memory_space<vmem>>, vector<16x512xf32>
    %cst_12 = arith.constant dense<0.000000e+00> : vector<16x512xf32>
    %31 = tpu.matmul %0, %30, %cst_12 {dimension_numbers = #tpu.dot_dimension_numbers<[1], [0], [0], [1], [0, 0, 1, 1], [], []>} : vector<16x16xf32>, vector<16x512xf32>, vector<16x512xf32> -> vector<16x512xf32>
    %32 = vector.extract_strided_slice %31 {offsets = [0, 0], sizes = [16, 256], strides = [1, 1]} : vector<16x512xf32> to vector<16x256xf32>
    %33 = vector.extract_strided_slice %31 {offsets = [0, 256], sizes = [16, 256], strides = [1, 1]} : vector<16x512xf32> to vector<16x256xf32>
    %34 = arith.mulf %32, %33 : vector<16x256xf32>
    %35 = arith.addf %29, %34 : vector<16x256xf32>
    %c0_13 = arith.constant 0 : index
    %c3072 = arith.constant 3072 : index
    %36 = vector.load %arg2[%c0_13, %c3072] : memref<16x4096xf32, #tpu.memory_space<vmem>>, vector<16x512xf32>
    %cst_14 = arith.constant dense<0.000000e+00> : vector<16x512xf32>
    %37 = tpu.matmul %0, %36, %cst_14 {dimension_numbers = #tpu.dot_dimension_numbers<[1], [0], [0], [1], [0, 0, 1, 1], [], []>} : vector<16x16xf32>, vector<16x512xf32>, vector<16x512xf32> -> vector<16x512xf32>
    %38 = vector.extract_strided_slice %37 {offsets = [0, 0], sizes = [16, 256], strides = [1, 1]} : vector<16x512xf32> to vector<16x256xf32>
    %39 = vector.extract_strided_slice %37 {offsets = [0, 256], sizes = [16, 256], strides = [1, 1]} : vector<16x512xf32> to vector<16x256xf32>
    %40 = arith.mulf %38, %39 : vector<16x256xf32>
    %41 = arith.addf %35, %40 : vector<16x256xf32>
    %c0_15 = arith.constant 0 : index
    %c3584 = arith.constant 3584 : index
    %42 = vector.load %arg2[%c0_15, %c3584] : memref<16x4096xf32, #tpu.memory_space<vmem>>, vector<16x512xf32>
    %cst_16 = arith.constant dense<0.000000e+00> : vector<16x512xf32>
    %43 = tpu.matmul %0, %42, %cst_16 {dimension_numbers = #tpu.dot_dimension_numbers<[1], [0], [0], [1], [0, 0, 1, 1], [], []>} : vector<16x16xf32>, vector<16x512xf32>, vector<16x512xf32> -> vector<16x512xf32>
    %44 = vector.extract_strided_slice %43 {offsets = [0, 0], sizes = [16, 256], strides = [1, 1]} : vector<16x512xf32> to vector<16x256xf32>
    %45 = vector.extract_strided_slice %43 {offsets = [0, 256], sizes = [16, 256], strides = [1, 1]} : vector<16x512xf32> to vector<16x256xf32>
    %46 = arith.mulf %44, %45 : vector<16x256xf32>
    %47 = arith.addf %41, %46 : vector<16x256xf32>
    %c0_17 = arith.constant 0 : index
    %c0_18 = arith.constant 0 : index
    %48 = vector.load %arg3[%c0_17, %c0_18] : memref<16x256xf32, #tpu.memory_space<vmem>>, vector<16x256xf32>
    tpu.vector_store %arg3[%c0_17, %c0_18], %47 {strides = array<i32>} : memref<16x256xf32, #tpu.memory_space<vmem>>, vector<16x256xf32>,
    return
  }
  func.func @transform_0(%arg0: i32) -> (i32, i32) {
    %c0_i32 = arith.constant 0 : i32
    %c0_i32_0 = arith.constant 0 : i32
    return %arg0, %c0_i32 : i32, i32
  }
  func.func @transform_1(%arg0: i32) -> (i32, i32) {
    %c0_i32 = arith.constant 0 : i32
    %c0_i32_0 = arith.constant 0 : i32
    %c0_i32_1 = arith.constant 0 : i32
    return %c0_i32, %c0_i32_0 : i32, i32
  }
  func.func @transform_2(%arg0: i32) -> (i32, i32) {
    %c0_i32 = arith.constant 0 : i32
    %c0_i32_0 = arith.constant 0 : i32
    return %arg0, %c0_i32 : i32, i32
  }
}

</mosaic_0001>

<llo_original>
// kernel: tpu_custom_call.1
$region0: #{tpu_custom_call.1}
  #allocation0 [shape = 'u32[]', space=smem, size = 0x4, offset = 0x4, fixed_abs, tag = 'smem constant byte address 0x4 - core index']
  #allocation1 [shape = 'u32[144,128]{1,0:T(1,128)}', space=vmem, size = 0x12000, scoped, tag = 'internal scratch']
  %s0 = inlined_call_operand.hbm [shape: f32[16,16], index: 0, kind: input, shape index: {}]
  %s1 = inlined_call_operand.hbm [shape: f32[16,4096], index: 1, kind: input, shape index: {}]
  %s2 = inlined_call_operand.hbm [shape: f32[16,256], index: 2, kind: output, shape index: {}]
  %s3 = sld [smem:[#allocation0]]
  $region26: #{tpu_custom_call.1} parent=0
    _
  %s5 = ssub.s32 1, %s3
  %s6 = scalar_select 0, %s5, %s3
  $region1: #{tpu_custom_call.1} parent=0
    #allocation2 [shape = 'u8[8192]{0}', space=vmem, size = 0x2000, scoped, tag = 'input window, operand 0, single buffered']
    #allocation3 [shape = 's32[1]{0}', space=sflag, size = 0x4, scoped, tag = 'scoped memory for tpu_custom_call.1']
    #allocation4 [shape = 's32[1]{0}', space=sflag, size = 0x4, scoped, tag = 'scoped memory for tpu_custom_call.1']
    #allocation5 [shape = 'u8[262144]{0}', space=vmem, size = 0x40000, scoped, tag = 'input window, operand 1, single buffered']
    #allocation6 [shape = 's32[1]{0}', space=sflag, size = 0x4, scoped, tag = 'scoped memory for tpu_custom_call.1']
    #allocation7 [shape = 'u8[16384]{0}', space=vmem, size = 0x4000, scoped, tag = 'output window, operand 0, single buffered']
    %7 = vsyncpa [#allocation3], 0
    %8 = vsyncpa [#allocation6], 0
    %9 = vsyncpa [#allocation4], 0
    // Predicated region
    $region2: #{tpu_custom_call.1} parent=1 // pred_check
      _
    $region3: #{tpu_custom_call.1} parent=1 // pred_check_branch
      %11 = sbr.rel (0) target = $region5
    $region4: #{tpu_custom_call.1} parent=1 // pred_region
      %s13 = ssub.s32 256, 256
      %14 = vsyncadd [#allocation3], %s13
      %s15 = sshll.u32 [#allocation2], 4
      %s16 = int_to_ptr.vmem [resolvable:$true] %s15
      %21 = dma.hbm_to_vmem [thread:$0]  %s0, 256, %s16, [#allocation3], 128, 128, 8
    $region5: #{tpu_custom_call.1} parent=1 // pred_fallthru
      _
    // Predicated region
    $region6: #{tpu_custom_call.1} parent=1 // pred_check
      _
    $region7: #{tpu_custom_call.1} parent=1 // pred_check_branch
      %23 = sbr.rel (0) target = $region9
    $region8: #{tpu_custom_call.1} parent=1 // pred_region
      %s25 = ssub.s32 8192, 8192
      %26 = vsyncadd [#allocation6], %s25
      %s27 = sshll.u32 [#allocation5], 4
      %s28 = int_to_ptr.vmem [resolvable:$true] %s27
      %33 = dma.hbm_to_vmem [thread:$0]  %s1, 8192, %s28, [#allocation6], 4096, 4096, 256
    $region9: #{tpu_custom_call.1} parent=1 // pred_fallthru
      _
    // Predicated region
    $region10: #{tpu_custom_call.1} parent=1 // pred_check
      _
    $region11: #{tpu_custom_call.1} parent=1 // pred_check_branch
      %35 = sbr.rel (0) target = $region13
    $region12: #{tpu_custom_call.1} parent=1 // pred_region
      %36 = dma.done [#allocation3], 256
    $region13: #{tpu_custom_call.1} parent=1 // pred_fallthru
      _
    // Predicated region
    $region14: #{tpu_custom_call.1} parent=1 // pred_check
      _
    $region15: #{tpu_custom_call.1} parent=1 // pred_check_branch
      %38 = sbr.rel (0) target = $region17
    $region16: #{tpu_custom_call.1} parent=1 // pred_region
      %39 = dma.done [#allocation6], 8192
    $region17: #{tpu_custom_call.1} parent=1 // pred_fallthru
      _
    %v40 = vld [vmem:[#allocation2] sm:$0xff]
    %v41 = vld [vmem:[#allocation2 + $0x8] sm:$0xff]
    %v42 = vld [vmem:[#allocation5] sm:$0xff]
    %v43 = vld [vmem:[#allocation5 + $0x8] sm:$0xff]
    %v44 = vld [vmem:[#allocation5 + $0x10] sm:$0xff]
    %v45 = vld [vmem:[#allocation5 + $0x18] sm:$0xff]
    %v46 = vld [vmem:[#allocation5 + $0x100] sm:$0xff]
    %v47 = vld [vmem:[#allocation5 + $0x108] sm:$0xff]
    %v48 = vld [vmem:[#allocation5 + $0x110] sm:$0xff]
    %v49 = vld [vmem:[#allocation5 + $0x118] sm:$0xff]
    %vm50 = vcmask 130048
    %v52 = vsel %vm50, %v40, 0
    %v55 = vsel %vm50, %v41, 0
    %57 = vmatprep.subr.mxu0 0.0
    %58 = vmatpush1.msra.mxu0 0.0
    %59 = vmatprep.subr.mxu0 0.0
    %60 = vmatpush1.msra.mxu0 0.0
    %61 = vmatprep.subr.mxu0 0.0
    %62 = vmatpush1.msra.mxu0 0.0
    %63 = vmatprep.subr.mxu0 0.0
    %64 = vmatpush1.msra.mxu0 0.0
    %65 = vmatprep.subr.mxu0 0.0
    %66 = vmatpush1.msra.mxu0 0.0
    %67 = vmatprep.subr.mxu0 0.0
    %68 = vmatpush1.msra.mxu0 0.0
    %69 = vmatprep.subr.mxu0 0.0
    %70 = vmatpush1.msra.mxu0 0.0
    %71 = vmatprep.subr.mxu0 0.0
    %72 = vmatpush1.msra.mxu0 0.0
    %73 = vmatprep.subr.mxu0 0.0
    %74 = vmatpush1.msra.mxu0 0.0
    %75 = vmatprep.subr.mxu0 0.0
    %76 = vmatpush1.msra.mxu0 0.0
    %77 = vmatprep.subr.mxu0 0.0
    %78 = vmatpush1.msra.mxu0 0.0
    %79 = vmatprep.subr.mxu0 0.0
    %80 = vmatpush1.msra.mxu0 0.0
    %81 = vmatprep.subr.mxu0 0.0
    %82 = vmatpush1.msra.mxu0 0.0
    %83 = vmatprep.subr.mxu0 0.0
    %84 = vmatpush1.msra.mxu0 0.0
    %85 = vmatprep.subr.mxu0 %v47
    %86 = vmatpush1.msra.mxu0 %v46
    %87 = vmatprep.subr.mxu0 %v43
    %88 = vmatpush1.msra.mxu0 %v42
    %89 = vmatprep.subr.mxu0 0.0
    %90 = vmatpush2.msra.mxu0 0.0
    %91 = vmatprep.subr.mxu0 0.0
    %92 = vmatpush2.msra.mxu0 0.0
    %93 = vmatprep.subr.mxu0 0.0
    %94 = vmatpush2.msra.mxu0 0.0
    %95 = vmatprep.subr.mxu0 0.0
    %96 = vmatpush2.msra.mxu0 0.0
    %97 = vmatprep.subr.mxu0 0.0
    %98 = vmatpush2.msra.mxu0 0.0
    %99 = vmatprep.subr.mxu0 0.0
    %100 = vmatpush2.msra.mxu0 0.0
    %101 = vmatprep.subr.mxu0 0.0
    %102 = vmatpush2.msra.mxu0 0.0
    %103 = vmatprep.subr.mxu0 0.0
    %104 = vmatpush2.msra.mxu0 0.0
    %105 = vmatprep.subr.mxu0 0.0
    %106 = vmatpush2.msra.mxu0 0.0
    %107 = vmatprep.subr.mxu0 0.0
    %108 = vmatpush2.msra.mxu0 0.0
    %109 = vmatprep.subr.mxu0 0.0
    %110 = vmatpush2.msra.mxu0 0.0
    %111 = vmatprep.subr.mxu0 0.0
    %112 = vmatpush2.msra.mxu0 0.0
    %113 = vmatprep.subr.mxu0 0.0
    %114 = vmatpush2.msra.mxu0 0.0
    %115 = vmatprep.subr.mxu0 0.0
    %116 = vmatpush2.msra.mxu0 0.0
    %117 = vmatprep.subr.mxu0 0.0
    %118 = vmatpush2.msra.mxu0 0.0
    %119 = vmatprep.subr.mxu0 0.0
    %120 = vmatpush2.msra.mxu0 0.0
    %121 = vmatprep.mubr.f32.mxu0 0.0
    %122 = vmatmul.mubr.f32.gmra.mxu0 %v52
    %v123 = vpop.f32.mrf.mxu0
    %v124 = vadd.f32 0.0, %v123
    %v125 = vpop.f32.mrf.mxu0
    %v126 = vadd.f32 0.0, %v125
    %127 = vmatprep.mubr.f32.mxu0 0.0
    %128 = vmatmul.mubr.f32.gmra.mxu0 %v55
    %v129 = vpop.f32.mrf.mxu0
    %v130 = vadd.f32 0.0, %v129
    %v131 = vpop.f32.mrf.mxu0
    %v132 = vadd.f32 0.0, %v131
    %133 = vdwg.mxu0
    %134 = vmatprep.subr.mxu0 0.0
    %135 = vmatpush1.msra.mxu0 0.0
    %136 = vmatprep.subr.mxu0 0.0
    %137 = vmatpush1.msra.mxu0 0.0
    %138 = vmatprep.subr.mxu0 0.0
    %139 = vmatpush1.msra.mxu0 0.0
    %140 = vmatprep.subr.mxu0 0.0
    %141 = vmatpush1.msra.mxu0 0.0
    %142 = vmatprep.subr.mxu0 0.0
    %143 = vmatpush1.msra.mxu0 0.0
    %144 = vmatprep.subr.mxu0 0.0
    %145 = vmatpush1.msra.mxu0 0.0
    %146 = vmatprep.subr.mxu0 0.0
    %147 = vmatpush1.msra.mxu0 0.0
    %148 = vmatprep.subr.mxu0 0.0
    %149 = vmatpush1.msra.mxu0 0.0
    %150 = vmatprep.subr.mxu0 0.0
    %151 = vmatpush1.msra.mxu0 0.0
    %152 = vmatprep.subr.mxu0 0.0
    %153 = vmatpush1.msra.mxu0 0.0
    %154 = vmatprep.subr.mxu0 0.0
    %155 = vmatpush1.msra.mxu0 0.0
    %156 = vmatprep.subr.mxu0 0.0
    %157 = vmatpush1.msra.mxu0 0.0
    %158 = vmatprep.subr.mxu0 0.0
    %159 = vmatpush1.msra.mxu0 0.0
    %160 = vmatprep.subr.mxu0 0.0
    %161 = vmatpush1.msra.mxu0 0.0
    %162 = vmatprep.subr.mxu0 %v49
    %163 = vmatpush1.msra.mxu0 %v48
    %164 = vmatprep.subr.mxu0 %v45
    %165 = vmatpush1.msra.mxu0 %v44
    %166 = vmatprep.subr.mxu0 0.0
    %167 = vmatpush2.msra.mxu0 0.0
    %168 = vmatprep.subr.mxu0 0.0
    %169 = vmatpush2.msra.mxu0 0.0
    %170 = vmatprep.subr.mxu0 0.0
    %171 = vmatpush2.msra.mxu0 0.0
    %172 = vmatprep.subr.mxu0 0.0
    %173 = vmatpush2.msra.mxu0 0.0
    %174 = vmatprep.subr.mxu0 0.0
    %175 = vmatpush2.msra.mxu0 0.0
    %176 = vmatprep.subr.mxu0 0.0
    %177 = vmatpush2.msra.mxu0 0.0
    %178 = vmatprep.subr.mxu0 0.0
    %179 = vmatpush2.msra.mxu0 0.0
    %180 = vmatprep.subr.mxu0 0.0
    %181 = vmatpush2.msra.mxu0 0.0
    %182 = vmatprep.subr.mxu0 0.0
    %183 = vmatpush2.msra.mxu0 0.0
    %184 = vmatprep.subr.mxu0 0.0
    %185 = vmatpush2.msra.mxu0 0.0
    %186 = vmatprep.subr.mxu0 0.0
    %187 = vmatpush2.msra.mxu0 0.0
    %188 = vmatprep.subr.mxu0 0.0
    %189 = vmatpush2.msra.mxu0 0.0
    %190 = vmatprep.subr.mxu0 0.0
    %191 = vmatpush2.msra.mxu0 0.0
    %192 = vmatprep.subr.mxu0 0.0
    %193 = vmatpush2.msra.mxu0 0.0
    %194 = vmatprep.subr.mxu0 0.0
    %195 = vmatpush2.msra.mxu0 0.0
    %196 = vmatprep.subr.mxu0 0.0
    %197 = vmatpush2.msra.mxu0 0.0
    %198 = vmatprep.mubr.f32.mxu0 0.0
    %199 = vmatmul.mubr.f32.gmra.mxu0 %v52
    %v200 = vpop.f32.mrf.mxu0
    %v201 = vadd.f32 0.0, %v200
    %v202 = vpop.f32.mrf.mxu0
    %v203 = vadd.f32 0.0, %v202
    %204 = vmatprep.mubr.f32.mxu0 0.0
    %205 = vmatmul.mubr.f32.gmra.mxu0 %v55
    %v206 = vpop.f32.mrf.mxu0
    %v207 = vadd.f32 0.0, %v206
    %v208 = vpop.f32.mrf.mxu0
    %v209 = vadd.f32 0.0, %v208
    %210 = vdwg.mxu0
    %v211 = vmul.f32 %v124, %v201
    %v212 = vmul.f32 %v126, %v203
    %v213 = vmul.f32 %v130, %v207
    %v214 = vmul.f32 %v132, %v209
    %v215 = vld [vmem:[#allocation5 + $0x20] sm:$0xff]
    %v216 = vld [vmem:[#allocation5 + $0x28] sm:$0xff]
    %v217 = vld [vmem:[#allocation5 + $0x30] sm:$0xff]
    %v218 = vld [vmem:[#allocation5 + $0x38] sm:$0xff]
    %v219 = vld [vmem:[#allocation5 + $0x120] sm:$0xff]
    %v220 = vld [vmem:[#allocation5 + $0x128] sm:$0xff]
    %v221 = vld [vmem:[#allocation5 + $0x130] sm:$0xff]
    %v222 = vld [vmem:[#allocation5 + $0x138] sm:$0xff]
    %223 = vmatprep.subr.mxu0 0.0
    %224 = vmatpush1.msra.mxu0 0.0
    %225 = vmatprep.subr.mxu0 0.0
    %226 = vmatpush1.msra.mxu0 0.0
    %227 = vmatprep.subr.mxu0 0.0
    %228 = vmatpush1.msra.mxu0 0.0
    %229 = vmatprep.subr.mxu0 0.0
    %230 = vmatpush1.msra.mxu0 0.0
    %231 = vmatprep.subr.mxu0 0.0
    %232 = vmatpush1.msra.mxu0 0.0
    %233 = vmatprep.subr.mxu0 0.0
    %234 = vmatpush1.msra.mxu0 0.0
    %235 = vmatprep.subr.mxu0 0.0
    %236 = vmatpush1.msra.mxu0 0.0
    %237 = vmatprep.subr.mxu0 0.0
    %238 = vmatpush1.msra.mxu0 0.0
    %239 = vmatprep.subr.mxu0 0.0
    %240 = vmatpush1.msra.mxu0 0.0
    %241 = vmatprep.subr.mxu0 0.0
    %242 = vmatpush1.msra.mxu0 0.0
    %243 = vmatprep.subr.mxu0 0.0
    %244 = vmatpush1.msra.mxu0 0.0
    %245 = vmatprep.subr.mxu0 0.0
    %246 = vmatpush1.msra.mxu0 0.0
    %247 = vmatprep.subr.mxu0 0.0
    %248 = vmatpush1.msra.mxu0 0.0
    %249 = vmatprep.subr.mxu0 0.0
    %250 = vmatpush1.msra.mxu0 0.0
    %251 = vmatprep.subr.mxu0 %v220
    %252 = vmatpush1.msra.mxu0 %v219
    %253 = vmatprep.subr.mxu0 %v216
    %254 = vmatpush1.msra.mxu0 %v215
    %255 = vmatprep.subr.mxu0 0.0
    %256 = vmatpush2.msra.mxu0 0.0
    %257 = vmatprep.subr.mxu0 0.0
    %258 = vmatpush2.msra.mxu0 0.0
    %259 = vmatprep.subr.mxu0 0.0
    %260 = vmatpush2.msra.mxu0 0.0
    %261 = vmatprep.subr.mxu0 0.0
    %262 = vmatpush2.msra.mxu0 0.0
    %263 = vmatprep.subr.mxu0 0.0
    %264 = vmatpush2.msra.mxu0 0.0
    %265 = vmatprep.subr.mxu0 0.0
    %266 = vmatpush2.msra.mxu0 0.0
    %267 = vmatprep.subr.mxu0 0.0
    %268 = vmatpush2.msra.mxu0 0.0
    %269 = vmatprep.subr.mxu0 0.0
    %270 = vmatpush2.msra.mxu0 0.0
    %271 = vmatprep.subr.mxu0 0.0
    %272 = vmatpush2.msra.mxu0 0.0
    %273 = vmatprep.subr.mxu0 0.0
    %274 = vmatpush2.msra.mxu0 0.0
    %275 = vmatprep.subr.mxu0 0.0
    %276 = vmatpush2.msra.mxu0 0.0
    %277 = vmatprep.subr.mxu0 0.0
    %278 = vmatpush2.msra.mxu0 0.0
    %279 = vmatprep.subr.mxu0 0.0
    %280 = vmatpush2.msra.mxu0 0.0
    %281 = vmatprep.subr.mxu0 0.0
    %282 = vmatpush2.msra.mxu0 0.0
    %283 = vmatprep.subr.mxu0 0.0
    %284 = vmatpush2.msra.mxu0 0.0
    %285 = vmatprep.subr.mxu0 0.0
    %286 = vmatpush2.msra.mxu0 0.0
    %287 = vmatprep.mubr.f32.mxu0 0.0
    %288 = vmatmul.mubr.f32.gmra.mxu0 %v52
    %v289 = vpop.f32.mrf.mxu0
    %v290 = vadd.f32 0.0, %v289
    %v291 = vpop.f32.mrf.mxu0
    %v292 = vadd.f32 0.0, %v291
    %293 = vmatprep.mubr.f32.mxu0 0.0
    %294 = vmatmul.mubr.f32.gmra.mxu0 %v55
    %v295 = vpop.f32.mrf.mxu0
    %v296 = vadd.f32 0.0, %v295
    %v297 = vpop.f32.mrf.mxu0
    %v298 = vadd.f32 0.0, %v297
    %299 = vdwg.mxu0
    %300 = vmatprep.subr.mxu0 0.0
    %301 = vmatpush1.msra.mxu0 0.0
    %302 = vmatprep.subr.mxu0 0.0
    %303 = vmatpush1.msra.mxu0 0.0
    %304 = vmatprep.subr.mxu0 0.0
    %305 = vmatpush1.msra.mxu0 0.0
    %306 = vmatprep.subr.mxu0 0.0
    %307 = vmatpush1.msra.mxu0 0.0
    %308 = vmatprep.subr.mxu0 0.0
    %309 = vmatpush1.msra.mxu0 0.0
    %310 = vmatprep.subr.mxu0 0.0
    %311 = vmatpush1.msra.mxu0 0.0
    %312 = vmatprep.subr.mxu0 0.0
    %313 = vmatpush1.msra.mxu0 0.0
    %314 = vmatprep.subr.mxu0 0.0
    %315 = vmatpush1.msra.mxu0 0.0
    %316 = vmatprep.subr.mxu0 0.0
    %317 = vmatpush1.msra.mxu0 0.0
    %318 = vmatprep.subr.mxu0 0.0
    %319 = vmatpush1.msra.mxu0 0.0
    %320 = vmatprep.subr.mxu0 0.0
    %321 = vmatpush1.msra.mxu0 0.0
    %322 = vmatprep.subr.mxu0 0.0
    %323 = vmatpush1.msra.mxu0 0.0
    %324 = vmatprep.subr.mxu0 0.0
    %325 = vmatpush1.msra.mxu0 0.0
    %326 = vmatprep.subr.mxu0 0.0
    %327 = vmatpush1.msra.mxu0 0.0
    %328 = vmatprep.subr.mxu0 %v222
    %329 = vmatpush1.msra.mxu0 %v221
    %330 = vmatprep.subr.mxu0 %v218
    %331 = vmatpush1.msra.mxu0 %v217
    %332 = vmatprep.subr.mxu0 0.0
    %333 = vmatpush2.msra.mxu0 0.0
    %334 = vmatprep.subr.mxu0 0.0
    %335 = vmatpush2.msra.mxu0 0.0
    %336 = vmatprep.subr.mxu0 0.0
    %337 = vmatpush2.msra.mxu0 0.0
    %338 = vmatprep.subr.mxu0 0.0
    %339 = vmatpush2.msra.mxu0 0.0
    %340 = vmatprep.subr.mxu0 0.0
    %341 = vmatpush2.msra.mxu0 0.0
    %342 = vmatprep.subr.mxu0 0.0
    %343 = vmatpush2.msra.mxu0 0.0
    %344 = vmatprep.subr.mxu0 0.0
    %345 = vmatpush2.msra.mxu0 0.0
    %346 = vmatprep.subr.mxu0 0.0
    %347 = vmatpush2.msra.mxu0 0.0
    %348 = vmatprep.subr.mxu0 0.0
    %349 = vmatpush2.msra.mxu0 0.0
    %350 = vmatprep.subr.mxu0 0.0
    %351 = vmatpush2.msra.mxu0 0.0
    %352 = vmatprep.subr.mxu0 0.0
    %353 = vmatpush2.msra.mxu0 0.0
    %354 = vmatprep.subr.mxu0 0.0
    %355 = vmatpush2.msra.mxu0 0.0
    %356 = vmatprep.subr.mxu0 0.0
    %357 = vmatpush2.msra.mxu0 0.0
    %358 = vmatprep.subr.mxu0 0.0
    %359 = vmatpush2.msra.mxu0 0.0
    %360 = vmatprep.subr.mxu0 0.0
    %361 = vmatpush2.msra.mxu0 0.0
    %362 = vmatprep.subr.mxu0 0.0
    %363 = vmatpush2.msra.mxu0 0.0
    %364 = vmatprep.mubr.f32.mxu0 0.0
    %365 = vmatmul.mubr.f32.gmra.mxu0 %v52
    %v366 = vpop.f32.mrf.mxu0
    %v367 = vadd.f32 0.0, %v366
    %v368 = vpop.f32.mrf.mxu0
    %v369 = vadd.f32 0.0, %v368
    %370 = vmatprep.mubr.f32.mxu0 0.0
    %371 = vmatmul.mubr.f32.gmra.mxu0 %v55
    %v372 = vpop.f32.mrf.mxu0
    %v373 = vadd.f32 0.0, %v372
    %v374 = vpop.f32.mrf.mxu0
    %v375 = vadd.f32 0.0, %v374
    %376 = vdwg.mxu0
    %v377 = vmul.f32 %v290, %v367
    %v378 = vmul.f32 %v292, %v369
    %v379 = vmul.f32 %v296, %v373
    %v380 = vmul.f32 %v298, %v375
    %v381 = vadd.f32 %v211, %v377
    %v382 = vadd.f32 %v212, %v378
    %v383 = vadd.f32 %v213, %v379
    %v384 = vadd.f32 %v214, %v380
    %v385 = vld [vmem:[#allocation5 + $0x40] sm:$0xff]
    %v386 = vld [vmem:[#allocation5 + $0x48] sm:$0xff]
    %v387 = vld [vmem:[#allocation5 + $0x50] sm:$0xff]
    %v388 = vld [vmem:[#allocation5 + $0x58] sm:$0xff]
    %v389 = vld [vmem:[#allocation5 + $0x140] sm:$0xff]
    %v390 = vld [vmem:[#allocation5 + $0x148] sm:$0xff]
    %v391 = vld [vmem:[#allocation5 + $0x150] sm:$0xff]
    %v392 = vld [vmem:[#allocation5 + $0x158] sm:$0xff]
    %393 = vmatprep.subr.mxu0 0.0
    %394 = vmatpush1.msra.mxu0 0.0
    %395 = vmatprep.subr.mxu0 0.0
    %396 = vmatpush1.msra.mxu0 0.0
    %397 = vmatprep.subr.mxu0 0.0
    %398 = vmatpush1.msra.mxu0 0.0
    %399 = vmatprep.subr.mxu0 0.0
    %400 = vmatpush1.msra.mxu0 0.0
    %401 = vmatprep.subr.mxu0 0.0
    %402 = vmatpush1.msra.mxu0 0.0
    %403 = vmatprep.subr.mxu0 0.0
    %404 = vmatpush1.msra.mxu0 0.0
    %405 = vmatprep.subr.mxu0 0.0
    %406 = vmatpush1.msra.mxu0 0.0
    %407 = vmatprep.subr.mxu0 0.0
    %408 = vmatpush1.msra.mxu0 0.0
    %409 = vmatprep.subr.mxu0 0.0
    %410 = vmatpush1.msra.mxu0 0.0
    %411 = vmatprep.subr.mxu0 0.0
    %412 = vmatpush1.msra.mxu0 0.0
    %413 = vmatprep.subr.mxu0 0.0
    %414 = vmatpush1.msra.mxu0 0.0
    %415 = vmatprep.subr.mxu0 0.0
    %416 = vmatpush1.msra.mxu0 0.0
    %417 = vmatprep.subr.mxu0 0.0
    %418 = vmatpush1.msra.mxu0 0.0
    %419 = vmatprep.subr.mxu0 0.0
    %420 = vmatpush1.msra.mxu0 0.0
    %421 = vmatprep.subr.mxu0 %v390
    %422 = vmatpush1.msra.mxu0 %v389
    %423 = vmatprep.subr.mxu0 %v386
    %424 = vmatpush1.msra.mxu0 %v385
    %425 = vmatprep.subr.mxu0 0.0
    %426 = vmatpush2.msra.mxu0 0.0
    %427 = vmatprep.subr.mxu0 0.0
    %428 = vmatpush2.msra.mxu0 0.0
    %429 = vmatprep.subr.mxu0 0.0
    %430 = vmatpush2.msra.mxu0 0.0
    %431 = vmatprep.subr.mxu0 0.0
    %432 = vmatpush2.msra.mxu0 0.0
    %433 = vmatprep.subr.mxu0 0.0
    %434 = vmatpush2.msra.mxu0 0.0
    %435 = vmatprep.subr.mxu0 0.0
    %436 = vmatpush2.msra.mxu0 0.0
    %437 = vmatprep.subr.mxu0 0.0
    %438 = vmatpush2.msra.mxu0 0.0
    %439 = vmatprep.subr.mxu0 0.0
    %440 = vmatpush2.msra.mxu0 0.0
    %441 = vmatprep.subr.mxu0 0.0
    %442 = vmatpush2.msra.mxu0 0.0
    %443 = vmatprep.subr.mxu0 0.0
    %444 = vmatpush2.msra.mxu0 0.0
    %445 = vmatprep.subr.mxu0 0.0
    %446 = vmatpush2.msra.mxu0 0.0
    %447 = vmatprep.subr.mxu0 0.0
    %448 = vmatpush2.msra.mxu0 0.0
    %449 = vmatprep.subr.mxu0 0.0
    %450 = vmatpush2.msra.mxu0 0.0
    %451 = vmatprep.subr.mxu0 0.0
    %452 = vmatpush2.msra.mxu0 0.0
    %453 = vmatprep.subr.mxu0 0.0
    %454 = vmatpush2.msra.mxu0 0.0
    %455 = vmatprep.subr.mxu0 0.0
    %456 = vmatpush2.msra.mxu0 0.0
    %457 = vmatprep.mubr.f32.mxu0 0.0
    %458 = vmatmul.mubr.f32.gmra.mxu0 %v52
    %v459 = vpop.f32.mrf.mxu0
    %v460 = vadd.f32 0.0, %v459
    %v461 = vpop.f32.mrf.mxu0
    %v462 = vadd.f32 0.0, %v461
    %463 = vmatprep.mubr.f32.mxu0 0.0
    %464 = vmatmul.mubr.f32.gmra.mxu0 %v55
    %v465 = vpop.f32.mrf.mxu0
    %v466 = vadd.f32 0.0, %v465
    %v467 = vpop.f32.mrf.mxu0
    %v468 = vadd.f32 0.0, %v467
    %469 = vdwg.mxu0
    %470 = vmatprep.subr.mxu0 0.0
    %471 = vmatpush1.msra.mxu0 0.0
    %472 = vmatprep.subr.mxu0 0.0
    %473 = vmatpush1.msra.mxu0 0.0
    %474 = vmatprep.subr.mxu0 0.0
    %475 = vmatpush1.msra.mxu0 0.0
    %476 = vmatprep.subr.mxu0 0.0
    %477 = vmatpush1.msra.mxu0 0.0
    %478 = vmatprep.subr.mxu0 0.0
    %479 = vmatpush1.msra.mxu0 0.0
    %480 = vmatprep.subr.mxu0 0.0
    %481 = vmatpush1.msra.mxu0 0.0
    %482 = vmatprep.subr.mxu0 0.0
    %483 = vmatpush1.msra.mxu0 0.0
    %484 = vmatprep.subr.mxu0 0.0
    %485 = vmatpush1.msra.mxu0 0.0
    %486 = vmatprep.subr.mxu0 0.0
    %487 = vmatpush1.msra.mxu0 0.0
    %488 = vmatprep.subr.mxu0 0.0
    %489 = vmatpush1.msra.mxu0 0.0
    %490 = vmatprep.subr.mxu0 0.0
    %491 = vmatpush1.msra.mxu0 0.0
    %492 = vmatprep.subr.mxu0 0.0
    %493 = vmatpush1.msra.mxu0 0.0
    %494 = vmatprep.subr.mxu0 0.0
    %495 = vmatpush1.msra.mxu0 0.0
    %496 = vmatprep.subr.mxu0 0.0
    %497 = vmatpush1.msra.mxu0 0.0
    %498 = vmatprep.subr.mxu0 %v392
    %499 = vmatpush1.msra.mxu0 %v391
    %500 = vmatprep.subr.mxu0 %v388
    %501 = vmatpush1.msra.mxu0 %v387
    %502 = vmatprep.subr.mxu0 0.0
    %503 = vmatpush2.msra.mxu0 0.0
    %504 = vmatprep.subr.mxu0 0.0
    %505 = vmatpush2.msra.mxu0 0.0
    %506 = vmatprep.subr.mxu0 0.0
    %507 = vmatpush2.msra.mxu0 0.0
    %508 = vmatprep.subr.mxu0 0.0
    %509 = vmatpush2.msra.mxu0 0.0
    %510 = vmatprep.subr.mxu0 0.0
    %511 = vmatpush2.msra.mxu0 0.0
    %512 = vmatprep.subr.mxu0 0.0
    %513 = vmatpush2.msra.mxu0 0.0
    %514 = vmatprep.subr.mxu0 0.0
    %515 = vmatpush2.msra.mxu0 0.0
    %516 = vmatprep.subr.mxu0 0.0
    %517 = vmatpush2.msra.mxu0 0.0
    %518 = vmatprep.subr.mxu0 0.0
    %519 = vmatpush2.msra.mxu0 0.0
    %520 = vmatprep.subr.mxu0 0.0
    %521 = vmatpush2.msra.mxu0 0.0
    %522 = vmatprep.subr.mxu0 0.0
    %523 = vmatpush2.msra.mxu0 0.0
    %524 = vmatprep.subr.mxu0 0.0
    %525 = vmatpush2.msra.mxu0 0.0
    %526 = vmatprep.subr.mxu0 0.0
    %527 = vmatpush2.msra.mxu0 0.0
    %528 = vmatprep.subr.mxu0 0.0
    %529 = vmatpush2.msra.mxu0 0.0
    %530 = vmatprep.subr.mxu0 0.0
    %531 = vmatpush2.msra.mxu0 0.0
    %532 = vmatprep.subr.mxu0 0.0
    %533 = vmatpush2.msra.mxu0 0.0
    %534 = vmatprep.mubr.f32.mxu0 0.0
    %535 = vmatmul.mubr.f32.gmra.mxu0 %v52
    %v536 = vpop.f32.mrf.mxu0
    %v537 = vadd.f32 0.0, %v536
    %v538 = vpop.f32.mrf.mxu0
    %v539 = vadd.f32 0.0, %v538
    %540 = vmatprep.mubr.f32.mxu0 0.0
    %541 = vmatmul.mubr.f32.gmra.mxu0 %v55
    %v542 = vpop.f32.mrf.mxu0
    %v543 = vadd.f32 0.0, %v542
    %v544 = vpop.f32.mrf.mxu0
    %v545 = vadd.f32 0.0, %v544
    %546 = vdwg.mxu0
    %v547 = vmul.f32 %v460, %v537
    %v548 = vmul.f32 %v462, %v539
    %v549 = vmul.f32 %v466, %v543
    %v550 = vmul.f32 %v468, %v545
    %v551 = vadd.f32 %v381, %v547
    %v552 = vadd.f32 %v382, %v548
    %v553 = vadd.f32 %v383, %v549
    %v554 = vadd.f32 %v384, %v550
    %v555 = vld [vmem:[#allocation5 + $0x60] sm:$0xff]
    %v556 = vld [vmem:[#allocation5 + $0x68] sm:$0xff]
    %v557 = vld [vmem:[#allocation5 + $0x70] sm:$0xff]
    %v558 = vld [vmem:[#allocation5 + $0x78] sm:$0xff]
    %v559 = vld [vmem:[#allocation5 + $0x160] sm:$0xff]
    %v560 = vld [vmem:[#allocation5 + $0x168] sm:$0xff]
    %v561 = vld [vmem:[#allocation5 + $0x170] sm:$0xff]
    %v562 = vld [vmem:[#allocation5 + $0x178] sm:$0xff]
    %563 = vmatprep.subr.mxu0 0.0
    %564 = vmatpush1.msra.mxu0 0.0
    %565 = vmatprep.subr.mxu0 0.0
    %566 = vmatpush1.msra.mxu0 0.0
    %567 = vmatprep.subr.mxu0 0.0
    %568 = vmatpush1.msra.mxu0 0.0
    %569 = vmatprep.subr.mxu0 0.0
    %570 = vmatpush1.msra.mxu0 0.0
    %571 = vmatprep.subr.mxu0 0.0
    %572 = vmatpush1.msra.mxu0 0.0
    %573 = vmatprep.subr.mxu0 0.0
    %574 = vmatpush1.msra.mxu0 0.0
    %575 = vmatprep.subr.mxu0 0.0
    %576 = vmatpush1.msra.mxu0 0.0
    %577 = vmatprep.subr.mxu0 0.0
    %578 = vmatpush1.msra.mxu0 0.0
    %579 = vmatprep.subr.mxu0 0.0
    %580 = vmatpush1.msra.mxu0 0.0
    %581 = vmatprep.subr.mxu0 0.0
    %582 = vmatpush1.msra.mxu0 0.0
    %583 = vmatprep.subr.mxu0 0.0
    %584 = vmatpush1.msra.mxu0 0.0
    %585 = vmatprep.subr.mxu0 0.0
    %586 = vmatpush1.msra.mxu0 0.0
    %587 = vmatprep.subr.mxu0 0.0
    %588 = vmatpush1.msra.mxu0 0.0
    %589 = vmatprep.subr.mxu0 0.0
    %590 = vmatpush1.msra.mxu0 0.0
    %591 = vmatprep.subr.mxu0 %v560
    %592 = vmatpush1.msra.mxu0 %v559
    %593 = vmatprep.subr.mxu0 %v556
    %594 = vmatpush1.msra.mxu0 %v555
    %595 = vmatprep.subr.mxu0 0.0
    %596 = vmatpush2.msra.mxu0 0.0
    %597 = vmatprep.subr.mxu0 0.0
    %598 = vmatpush2.msra.mxu0 0.0
    %599 = vmatprep.subr.mxu0 0.0
    %600 = vmatpush2.msra.mxu0 0.0
    %601 = vmatprep.subr.mxu0 0.0
    %602 = vmatpush2.msra.mxu0 0.0
    %603 = vmatprep.subr.mxu0 0.0
    %604 = vmatpush2.msra.mxu0 0.0
    %605 = vmatprep.subr.mxu0 0.0
    %606 = vmatpush2.msra.mxu0 0.0
    %607 = vmatprep.subr.mxu0 0.0
    %608 = vmatpush2.msra.mxu0 0.0
    %609 = vmatprep.subr.mxu0 0.0
    %610 = vmatpush2.msra.mxu0 0.0
    %611 = vmatprep.subr.mxu0 0.0
    %612 = vmatpush2.msra.mxu0 0.0
    %613 = vmatprep.subr.mxu0 0.0
    %614 = vmatpush2.msra.mxu0 0.0
    %615 = vmatprep.subr.mxu0 0.0
    %616 = vmatpush2.msra.mxu0 0.0
    %617 = vmatprep.subr.mxu0 0.0
    %618 = vmatpush2.msra.mxu0 0.0
    %619 = vmatprep.subr.mxu0 0.0
    %620 = vmatpush2.msra.mxu0 0.0
    %621 = vmatprep.subr.mxu0 0.0
    %622 = vmatpush2.msra.mxu0 0.0
    %623 = vmatprep.subr.mxu0 0.0
    %624 = vmatpush2.msra.mxu0 0.0
    %625 = vmatprep.subr.mxu0 0.0
    %626 = vmatpush2.msra.mxu0 0.0
    %627 = vmatprep.mubr.f32.mxu0 0.0
    %628 = vmatmul.mubr.f32.gmra.mxu0 %v52
    %v629 = vpop.f32.mrf.mxu0
    %v630 = vadd.f32 0.0, %v629
    %v631 = vpop.f32.mrf.mxu0
    %v632 = vadd.f32 0.0, %v631
    %633 = vmatprep.mubr.f32.mxu0 0.0
    %634 = vmatmul.mubr.f32.gmra.mxu0 %v55
    %v635 = vpop.f32.mrf.mxu0
    %v636 = vadd.f32 0.0, %v635
    %v637 = vpop.f32.mrf.mxu0
    %v638 = vadd.f32 0.0, %v637
    %639 = vdwg.mxu0
    %640 = vmatprep.subr.mxu0 0.0
    %641 = vmatpush1.msra.mxu0 0.0
    %642 = vmatprep.subr.mxu0 0.0
    %643 = vmatpush1.msra.mxu0 0.0
    %644 = vmatprep.subr.mxu0 0.0
    %645 = vmatpush1.msra.mxu0 0.0
    %646 = vmatprep.subr.mxu0 0.0
    %647 = vmatpush1.msra.mxu0 0.0
    %648 = vmatprep.subr.mxu0 0.0
    %649 = vmatpush1.msra.mxu0 0.0
    %650 = vmatprep.subr.mxu0 0.0
    %651 = vmatpush1.msra.mxu0 0.0
    %652 = vmatprep.subr.mxu0 0.0
    %653 = vmatpush1.msra.mxu0 0.0
    %654 = vmatprep.subr.mxu0 0.0
    %655 = vmatpush1.msra.mxu0 0.0
    %656 = vmatprep.subr.mxu0 0.0
    %657 = vmatpush1.msra.mxu0 0.0
    %658 = vmatprep.subr.mxu0 0.0
    %659 = vmatpush1.msra.mxu0 0.0
    %660 = vmatprep.subr.mxu0 0.0
    %661 = vmatpush1.msra.mxu0 0.0
    %662 = vmatprep.subr.mxu0 0.0
    %663 = vmatpush1.msra.mxu0 0.0
    %664 = vmatprep.subr.mxu0 0.0
    %665 = vmatpush1.msra.mxu0 0.0
    %666 = vmatprep.subr.mxu0 0.0
    %667 = vmatpush1.msra.mxu0 0.0
    %668 = vmatprep.subr.mxu0 %v562
    %669 = vmatpush1.msra.mxu0 %v561
    %670 = vmatprep.subr.mxu0 %v558
    %671 = vmatpush1.msra.mxu0 %v557
    %672 = vmatprep.subr.mxu0 0.0
    %673 = vmatpush2.msra.mxu0 0.0
    %674 = vmatprep.subr.mxu0 0.0
    %675 = vmatpush2.msra.mxu0 0.0
    %676 = vmatprep.subr.mxu0 0.0
    %677 = vmatpush2.msra.mxu0 0.0
    %678 = vmatprep.subr.mxu0 0.0
    %679 = vmatpush2.msra.mxu0 0.0
    %680 = vmatprep.subr.mxu0 0.0
    %681 = vmatpush2.msra.mxu0 0.0
    %682 = vmatprep.subr.mxu0 0.0
    %683 = vmatpush2.msra.mxu0 0.0
    %684 = vmatprep.subr.mxu0 0.0
    %685 = vmatpush2.msra.mxu0 0.0
    %686 = vmatprep.subr.mxu0 0.0
    %687 = vmatpush2.msra.mxu0 0.0
    %688 = vmatprep.subr.mxu0 0.0
    %689 = vmatpush2.msra.mxu0 0.0
    %690 = vmatprep.subr.mxu0 0.0
    %691 = vmatpush2.msra.mxu0 0.0
    %692 = vmatprep.subr.mxu0 0.0
    %693 = vmatpush2.msra.mxu0 0.0
    %694 = vmatprep.subr.mxu0 0.0
    %695 = vmatpush2.msra.mxu0 0.0
    %696 = vmatprep.subr.mxu0 0.0
    %697 = vmatpush2.msra.mxu0 0.0
    %698 = vmatprep.subr.mxu0 0.0
    %699 = vmatpush2.msra.mxu0 0.0
    %700 = vmatprep.subr.mxu0 0.0
    %701 = vmatpush2.msra.mxu0 0.0
    %702 = vmatprep.subr.mxu0 0.0
    %703 = vmatpush2.msra.mxu0 0.0
    %704 = vmatprep.mubr.f32.mxu0 0.0
    %705 = vmatmul.mubr.f32.gmra.mxu0 %v52
    %v706 = vpop.f32.mrf.mxu0
    %v707 = vadd.f32 0.0, %v706
    %v708 = vpop.f32.mrf.mxu0
    %v709 = vadd.f32 0.0, %v708
    %710 = vmatprep.mubr.f32.mxu0 0.0
    %711 = vmatmul.mubr.f32.gmra.mxu0 %v55
    %v712 = vpop.f32.mrf.mxu0
    %v713 = vadd.f32 0.0, %v712
    %v714 = vpop.f32.mrf.mxu0
    %v715 = vadd.f32 0.0, %v714
    %716 = vdwg.mxu0
    %v717 = vmul.f32 %v630, %v707
    %v718 = vmul.f32 %v632, %v709
    %v719 = vmul.f32 %v636, %v713
    %v720 = vmul.f32 %v638, %v715
    %v721 = vadd.f32 %v551, %v717
    %v722 = vadd.f32 %v552, %v718
    %v723 = vadd.f32 %v553, %v719
    %v724 = vadd.f32 %v554, %v720
    %v725 = vld [vmem:[#allocation5 + $0x80] sm:$0xff]
    %v726 = vld [vmem:[#allocation5 + $0x88] sm:$0xff]
    %v727 = vld [vmem:[#allocation5 + $0x90] sm:$0xff]
    %v728 = vld [vmem:[#allocation5 + $0x98] sm:$0xff]
    %v729 = vld [vmem:[#allocation5 + $0x180] sm:$0xff]
    %v730 = vld [vmem:[#allocation5 + $0x188] sm:$0xff]
    %v731 = vld [vmem:[#allocation5 + $0x190] sm:$0xff]
    %v732 = vld [vmem:[#allocation5 + $0x198] sm:$0xff]
    %733 = vmatprep.subr.mxu0 0.0
    %734 = vmatpush1.msra.mxu0 0.0
    %735 = vmatprep.subr.mxu0 0.0
    %736 = vmatpush1.msra.mxu0 0.0
    %737 = vmatprep.subr.mxu0 0.0
    %738 = vmatpush1.msra.mxu0 0.0
    %739 = vmatprep.subr.mxu0 0.0
    %740 = vmatpush1.msra.mxu0 0.0
    %741 = vmatprep.subr.mxu0 0.0
    %742 = vmatpush1.msra.mxu0 0.0
    %743 = vmatprep.subr.mxu0 0.0
    %744 = vmatpush1.msra.mxu0 0.0
    %745 = vmatprep.subr.mxu0 0.0
    %746 = vmatpush1.msra.mxu0 0.0
    %747 = vmatprep.subr.mxu0 0.0
    %748 = vmatpush1.msra.mxu0 0.0
    %749 = vmatprep.subr.mxu0 0.0
    %750 = vmatpush1.msra.mxu0 0.0
    %751 = vmatprep.subr.mxu0 0.0
    %752 = vmatpush1.msra.mxu0 0.0
    %753 = vmatprep.subr.mxu0 0.0
    %754 = vmatpush1.msra.mxu0 0.0
    %755 = vmatprep.subr.mxu0 0.0
    %756 = vmatpush1.msra.mxu0 0.0
    %757 = vmatprep.subr.mxu0 0.0
    %758 = vmatpush1.msra.mxu0 0.0
    %759 = vmatprep.subr.mxu0 0.0
    %760 = vmatpush1.msra.mxu0 0.0
    %761 = vmatprep.subr.mxu0 %v730
    %762 = vmatpush1.msra.mxu0 %v729
    %763 = vmatprep.subr.mxu0 %v726
    %764 = vmatpush1.msra.mxu0 %v725
    %765 = vmatprep.subr.mxu0 0.0
    %766 = vmatpush2.msra.mxu0 0.0
    %767 = vmatprep.subr.mxu0 0.0
    %768 = vmatpush2.msra.mxu0 0.0
    %769 = vmatprep.subr.mxu0 0.0
    %770 = vmatpush2.msra.mxu0 0.0
    %771 = vmatprep.subr.mxu0 0.0
    %772 = vmatpush2.msra.mxu0 0.0
    %773 = vmatprep.subr.mxu0 0.0
    %774 = vmatpush2.msra.mxu0 0.0
    %775 = vmatprep.subr.mxu0 0.0
    %776 = vmatpush2.msra.mxu0 0.0
    %777 = vmatprep.subr.mxu0 0.0
    %778 = vmatpush2.msra.mxu0 0.0
    %779 = vmatprep.subr.mxu0 0.0
    %780 = vmatpush2.msra.mxu0 0.0
    %781 = vmatprep.subr.mxu0 0.0
    %782 = vmatpush2.msra.mxu0 0.0
    %783 = vmatprep.subr.mxu0 0.0
    %784 = vmatpush2.msra.mxu0 0.0
    %785 = vmatprep.subr.mxu0 0.0
    %786 = vmatpush2.msra.mxu0 0.0
    %787 = vmatprep.subr.mxu0 0.0
    %788 = vmatpush2.msra.mxu0 0.0
    %789 = vmatprep.subr.mxu0 0.0
    %790 = vmatpush2.msra.mxu0 0.0
    %791 = vmatprep.subr.mxu0 0.0
    %792 = vmatpush2.msra.mxu0 0.0
    %793 = vmatprep.subr.mxu0 0.0
    %794 = vmatpush2.msra.mxu0 0.0
    %795 = vmatprep.subr.mxu0 0.0
    %796 = vmatpush2.msra.mxu0 0.0
    %797 = vmatprep.mubr.f32.mxu0 0.0
    %798 = vmatmul.mubr.f32.gmra.mxu0 %v52
    %v799 = vpop.f32.mrf.mxu0
    %v800 = vadd.f32 0.0, %v799
    %v801 = vpop.f32.mrf.mxu0
    %v802 = vadd.f32 0.0, %v801
    %803 = vmatprep.mubr.f32.mxu0 0.0
    %804 = vmatmul.mubr.f32.gmra.mxu0 %v55
    %v805 = vpop.f32.mrf.mxu0
    %v806 = vadd.f32 0.0, %v805
    %v807 = vpop.f32.mrf.mxu0
    %v808 = vadd.f32 0.0, %v807
    %809 = vdwg.mxu0
    %810 = vmatprep.subr.mxu0 0.0
    %811 = vmatpush1.msra.mxu0 0.0
    %812 = vmatprep.subr.mxu0 0.0
    %813 = vmatpush1.msra.mxu0 0.0
    %814 = vmatprep.subr.mxu0 0.0
    %815 = vmatpush1.msra.mxu0 0.0
    %816 = vmatprep.subr.mxu0 0.0
    %817 = vmatpush1.msra.mxu0 0.0
    %818 = vmatprep.subr.mxu0 0.0
    %819 = vmatpush1.msra.mxu0 0.0
    %820 = vmatprep.subr.mxu0 0.0
    %821 = vmatpush1.msra.mxu0 0.0
    %822 = vmatprep.subr.mxu0 0.0
    %823 = vmatpush1.msra.mxu0 0.0
    %824 = vmatprep.subr.mxu0 0.0
    %825 = vmatpush1.msra.mxu0 0.0
    %826 = vmatprep.subr.mxu0 0.0
    %827 = vmatpush1.msra.mxu0 0.0
    %828 = vmatprep.subr.mxu0 0.0
    %829 = vmatpush1.msra.mxu0 0.0
    %830 = vmatprep.subr.mxu0 0.0
    %831 = vmatpush1.msra.mxu0 0.0
    %832 = vmatprep.subr.mxu0 0.0
    %833 = vmatpush1.msra.mxu0 0.0
    %834 = vmatprep.subr.mxu0 0.0
    %835 = vmatpush1.msra.mxu0 0.0
    %836 = vmatprep.subr.mxu0 0.0
    %837 = vmatpush1.msra.mxu0 0.0
    %838 = vmatprep.subr.mxu0 %v732
    %839 = vmatpush1.msra.mxu0 %v731
    %840 = vmatprep.subr.mxu0 %v728
    %841 = vmatpush1.msra.mxu0 %v727
    %842 = vmatprep.subr.mxu0 0.0
    %843 = vmatpush2.msra.mxu0 0.0
    %844 = vmatprep.subr.mxu0 0.0
    %845 = vmatpush2.msra.mxu0 0.0
    %846 = vmatprep.subr.mxu0 0.0
    %847 = vmatpush2.msra.mxu0 0.0
    %848 = vmatprep.subr.mxu0 0.0
    %849 = vmatpush2.msra.mxu0 0.0
    %850 = vmatprep.subr.mxu0 0.0
    %851 = vmatpush2.msra.mxu0 0.0
    %852 = vmatprep.subr.mxu0 0.0
    %853 = vmatpush2.msra.mxu0 0.0
    %854 = vmatprep.subr.mxu0 0.0
    %855 = vmatpush2.msra.mxu0 0.0
    %856 = vmatprep.subr.mxu0 0.0
    %857 = vmatpush2.msra.mxu0 0.0
    %858 = vmatprep.subr.mxu0 0.0
    %859 = vmatpush2.msra.mxu0 0.0
    %860 = vmatprep.subr.mxu0 0.0
    %861 = vmatpush2.msra.mxu0 0.0
    %862 = vmatprep.subr.mxu0 0.0
    %863 = vmatpush2.msra.mxu0 0.0
    %864 = vmatprep.subr.mxu0 0.0
    %865 = vmatpush2.msra.mxu0 0.0
    %866 = vmatprep.subr.mxu0 0.0
    %867 = vmatpush2.msra.mxu0 0.0
    %868 = vmatprep.subr.mxu0 0.0
    %869 = vmatpush2.msra.mxu0 0.0
    %870 = vmatprep.subr.mxu0 0.0
    %871 = vmatpush2.msra.mxu0 0.0
    %872 = vmatprep.subr.mxu0 0.0
    %873 = vmatpush2.msra.mxu0 0.0
    %874 = vmatprep.mubr.f32.mxu0 0.0
    %875 = vmatmul.mubr.f32.gmra.mxu0 %v52
    %v876 = vpop.f32.mrf.mxu0
    %v877 = vadd.f32 0.0, %v876
    %v878 = vpop.f32.mrf.mxu0
    %v879 = vadd.f32 0.0, %v878
    %880 = vmatprep.mubr.f32.mxu0 0.0
    %881 = vmatmul.mubr.f32.gmra.mxu0 %v55
    %v882 = vpop.f32.mrf.mxu0
    %v883 = vadd.f32 0.0, %v882
    %v884 = vpop.f32.mrf.mxu0
    %v885 = vadd.f32 0.0, %v884
    %886 = vdwg.mxu0
    %v887 = vmul.f32 %v800, %v877
    %v888 = vmul.f32 %v802, %v879
    %v889 = vmul.f32 %v806, %v883
    %v890 = vmul.f32 %v808, %v885
    %v891 = vadd.f32 %v721, %v887
    %v892 = vadd.f32 %v722, %v888
    %v893 = vadd.f32 %v723, %v889
    %v894 = vadd.f32 %v724, %v890
    %v895 = vld [vmem:[#allocation5 + $0xa0] sm:$0xff]
    %v896 = vld [vmem:[#allocation5 + $0xa8] sm:$0xff]
    %v897 = vld [vmem:[#allocation5 + $0xb0] sm:$0xff]
    %v898 = vld [vmem:[#allocation5 + $0xb8] sm:$0xff]
    %v899 = vld [vmem:[#allocation5 + $0x1a0] sm:$0xff]
    %v900 = vld [vmem:[#allocation5 + $0x1a8] sm:$0xff]
    %v901 = vld [vmem:[#allocation5 + $0x1b0] sm:$0xff]
    %v902 = vld [vmem:[#allocation5 + $0x1b8] sm:$0xff]
    %903 = vmatprep.subr.mxu0 0.0
    %904 = vmatpush1.msra.mxu0 0.0
    %905 = vmatprep.subr.mxu0 0.0
    %906 = vmatpush1.msra.mxu0 0.0
    %907 = vmatprep.subr.mxu0 0.0
    %908 = vmatpush1.msra.mxu0 0.0
    %909 = vmatprep.subr.mxu0 0.0
    %910 = vmatpush1.msra.mxu0 0.0
    %911 = vmatprep.subr.mxu0 0.0
    %912 = vmatpush1.msra.mxu0 0.0
    %913 = vmatprep.subr.mxu0 0.0
    %914 = vmatpush1.msra.mxu0 0.0
    %915 = vmatprep.subr.mxu0 0.0
    %916 = vmatpush1.msra.mxu0 0.0
    %917 = vmatprep.subr.mxu0 0.0
    %918 = vmatpush1.msra.mxu0 0.0
    %919 = vmatprep.subr.mxu0 0.0
    %920 = vmatpush1.msra.mxu0 0.0
    %921 = vmatprep.subr.mxu0 0.0
    %922 = vmatpush1.msra.mxu0 0.0
    %923 = vmatprep.subr.mxu0 0.0
    %924 = vmatpush1.msra.mxu0 0.0
    %925 = vmatprep.subr.mxu0 0.0
    %926 = vmatpush1.msra.mxu0 0.0
    %927 = vmatprep.subr.mxu0 0.0
    %928 = vmatpush1.msra.mxu0 0.0
    %929 = vmatprep.subr.mxu0 0.0
    %930 = vmatpush1.msra.mxu0 0.0
    %931 = vmatprep.subr.mxu0 %v900
    %932 = vmatpush1.msra.mxu0 %v899
    %933 = vmatprep.subr.mxu0 %v896
    %934 = vmatpush1.msra.mxu0 %v895
    %935 = vmatprep.subr.mxu0 0.0
    %936 = vmatpush2.msra.mxu0 0.0
    %937 = vmatprep.subr.mxu0 0.0
    %938 = vmatpush2.msra.mxu0 0.0
    %939 = vmatprep.subr.mxu0 0.0
    %940 = vmatpush2.msra.mxu0 0.0
    %941 = vmatprep.subr.mxu0 0.0
    %942 = vmatpush2.msra.mxu0 0.0
    %943 = vmatprep.subr.mxu0 0.0
    %944 = vmatpush2.msra.mxu0 0.0
    %945 = vmatprep.subr.mxu0 0.0
    %946 = vmatpush2.msra.mxu0 0.0
    %947 = vmatprep.subr.mxu0 0.0
    %948 = vmatpush2.msra.mxu0 0.0
    %949 = vmatprep.subr.mxu0 0.0
    %950 = vmatpush2.msra.mxu0 0.0
    %951 = vmatprep.subr.mxu0 0.0
    %952 = vmatpush2.msra.mxu0 0.0
    %953 = vmatprep.subr.mxu0 0.0
    %954 = vmatpush2.msra.mxu0 0.0
    %955 = vmatprep.subr.mxu0 0.0
    %956 = vmatpush2.msra.mxu0 0.0
    %957 = vmatprep.subr.mxu0 0.0
    %958 = vmatpush2.msra.mxu0 0.0
    %959 = vmatprep.subr.mxu0 0.0
    %960 = vmatpush2.msra.mxu0 0.0
    %961 = vmatprep.subr.mxu0 0.0
    %962 = vmatpush2.msra.mxu0 0.0
    %963 = vmatprep.subr.mxu0 0.0
    %964 = vmatpush2.msra.mxu0 0.0
    %965 = vmatprep.subr.mxu0 0.0
    %966 = vmatpush2.msra.mxu0 0.0
    %967 = vmatprep.mubr.f32.mxu0 0.0
    %968 = vmatmul.mubr.f32.gmra.mxu0 %v52
    %v969 = vpop.f32.mrf.mxu0
    %v970 = vadd.f32 0.0, %v969
    %v971 = vpop.f32.mrf.mxu0
    %v972 = vadd.f32 0.0, %v971
    %973 = vmatprep.mubr.f32.mxu0 0.0
    %974 = vmatmul.mubr.f32.gmra.mxu0 %v55
    %v975 = vpop.f32.mrf.mxu0
    %v976 = vadd.f32 0.0, %v975
    %v977 = vpop.f32.mrf.mxu0
    %v978 = vadd.f32 0.0, %v977
    %979 = vdwg.mxu0
    %980 = vmatprep.subr.mxu0 0.0
    %981 = vmatpush1.msra.mxu0 0.0
    %982 = vmatprep.subr.mxu0 0.0
    %983 = vmatpush1.msra.mxu0 0.0
    %984 = vmatprep.subr.mxu0 0.0
    %985 = vmatpush1.msra.mxu0 0.0
    %986 = vmatprep.subr.mxu0 0.0
    %987 = vmatpush1.msra.mxu0 0.0
    %988 = vmatprep.subr.mxu0 0.0
    %989 = vmatpush1.msra.mxu0 0.0
    %990 = vmatprep.subr.mxu0 0.0
    %991 = vmatpush1.msra.mxu0 0.0
    %992 = vmatprep.subr.mxu0 0.0
    %993 = vmatpush1.msra.mxu0 0.0
    %994 = vmatprep.subr.mxu0 0.0
    %995 = vmatpush1.msra.mxu0 0.0
    %996 = vmatprep.subr.mxu0 0.0
    %997 = vmatpush1.msra.mxu0 0.0
    %998 = vmatprep.subr.mxu0 0.0
    %999 = vmatpush1.msra.mxu0 0.0
    %1000 = vmatprep.subr.mxu0 0.0
    %1001 = vmatpush1.msra.mxu0 0.0
    %1002 = vmatprep.subr.mxu0 0.0
    %1003 = vmatpush1.msra.mxu0 0.0
    %1004 = vmatprep.subr.mxu0 0.0
    %1005 = vmatpush1.msra.mxu0 0.0
    %1006 = vmatprep.subr.mxu0 0.0
    %1007 = vmatpush1.msra.mxu0 0.0
    %1008 = vmatprep.subr.mxu0 %v902
    %1009 = vmatpush1.msra.mxu0 %v901
    %1010 = vmatprep.subr.mxu0 %v898
    %1011 = vmatpush1.msra.mxu0 %v897
    %1012 = vmatprep.subr.mxu0 0.0
    %1013 = vmatpush2.msra.mxu0 0.0
    %1014 = vmatprep.subr.mxu0 0.0
    %1015 = vmatpush2.msra.mxu0 0.0
    %1016 = vmatprep.subr.mxu0 0.0
    %1017 = vmatpush2.msra.mxu0 0.0
    %1018 = vmatprep.subr.mxu0 0.0
    %1019 = vmatpush2.msra.mxu0 0.0
    %1020 = vmatprep.subr.mxu0 0.0
    %1021 = vmatpush2.msra.mxu0 0.0
    %1022 = vmatprep.subr.mxu0 0.0
    %1023 = vmatpush2.msra.mxu0 0.0
    %1024 = vmatprep.subr.mxu0 0.0
    %1025 = vmatpush2.msra.mxu0 0.0
    %1026 = vmatprep.subr.mxu0 0.0
    %1027 = vmatpush2.msra.mxu0 0.0
    %1028 = vmatprep.subr.mxu0 0.0
    %1029 = vmatpush2.msra.mxu0 0.0
    %1030 = vmatprep.subr.mxu0 0.0
    %1031 = vmatpush2.msra.mxu0 0.0
    %1032 = vmatprep.subr.mxu0 0.0
    %1033 = vmatpush2.msra.mxu0 0.0
    %1034 = vmatprep.subr.mxu0 0.0
    %1035 = vmatpush2.msra.mxu0 0.0
    %1036 = vmatprep.subr.mxu0 0.0
    %1037 = vmatpush2.msra.mxu0 0.0
    %1038 = vmatprep.subr.mxu0 0.0
    %1039 = vmatpush2.msra.mxu0 0.0
    %1040 = vmatprep.subr.mxu0 0.0
    %1041 = vmatpush2.msra.mxu0 0.0
    %1042 = vmatprep.subr.mxu0 0.0
    %1043 = vmatpush2.msra.mxu0 0.0
    %1044 = vmatprep.mubr.f32.mxu0 0.0
    %1045 = vmatmul.mubr.f32.gmra.mxu0 %v52
    %v1046 = vpop.f32.mrf.mxu0
    %v1047 = vadd.f32 0.0, %v1046
    %v1048 = vpop.f32.mrf.mxu0
    %v1049 = vadd.f32 0.0, %v1048
    %1050 = vmatprep.mubr.f32.mxu0 0.0
    %1051 = vmatmul.mubr.f32.gmra.mxu0 %v55
    %v1052 = vpop.f32.mrf.mxu0
    %v1053 = vadd.f32 0.0, %v1052
    %v1054 = vpop.f32.mrf.mxu0
    %v1055 = vadd.f32 0.0, %v1054
    %1056 = vdwg.mxu0
    %v1057 = vmul.f32 %v970, %v1047
    %v1058 = vmul.f32 %v972, %v1049
    %v1059 = vmul.f32 %v976, %v1053
    %v1060 = vmul.f32 %v978, %v1055
    %v1061 = vadd.f32 %v891, %v1057
    %v1062 = vadd.f32 %v892, %v1058
    %v1063 = vadd.f32 %v893, %v1059
    %v1064 = vadd.f32 %v894, %v1060
    %v1065 = vld [vmem:[#allocation5 + $0xc0] sm:$0xff]
    %v1066 = vld [vmem:[#allocation5 + $0xc8] sm:$0xff]
    %v1067 = vld [vmem:[#allocation5 + $0xd0] sm:$0xff]
    %v1068 = vld [vmem:[#allocation5 + $0xd8] sm:$0xff]
    %v1069 = vld [vmem:[#allocation5 + $0x1c0] sm:$0xff]
    %v1070 = vld [vmem:[#allocation5 + $0x1c8] sm:$0xff]
    %v1071 = vld [vmem:[#allocation5 + $0x1d0] sm:$0xff]
    %v1072 = vld [vmem:[#allocation5 + $0x1d8] sm:$0xff]
    %1073 = vmatprep.subr.mxu0 0.0
    %1074 = vmatpush1.msra.mxu0 0.0
    %1075 = vmatprep.subr.mxu0 0.0
    %1076 = vmatpush1.msra.mxu0 0.0
    %1077 = vmatprep.subr.mxu0 0.0
    %1078 = vmatpush1.msra.mxu0 0.0
    %1079 = vmatprep.subr.mxu0 0.0
    %1080 = vmatpush1.msra.mxu0 0.0
    %1081 = vmatprep.subr.mxu0 0.0
    %1082 = vmatpush1.msra.mxu0 0.0
    %1083 = vmatprep.subr.mxu0 0.0
    %1084 = vmatpush1.msra.mxu0 0.0
    %1085 = vmatprep.subr.mxu0 0.0
    %1086 = vmatpush1.msra.mxu0 0.0
    %1087 = vmatprep.subr.mxu0 0.0
    %1088 = vmatpush1.msra.mxu0 0.0
    %1089 = vmatprep.subr.mxu0 0.0
    %1090 = vmatpush1.msra.mxu0 0.0
    %1091 = vmatprep.subr.mxu0 0.0
    %1092 = vmatpush1.msra.mxu0 0.0
    %1093 = vmatprep.subr.mxu0 0.0
    %1094 = vmatpush1.msra.mxu0 0.0
    %1095 = vmatprep.subr.mxu0 0.0
    %1096 = vmatpush1.msra.mxu0 0.0
    %1097 = vmatprep.subr.mxu0 0.0
    %1098 = vmatpush1.msra.mxu0 0.0
    %1099 = vmatprep.subr.mxu0 0.0
    %1100 = vmatpush1.msra.mxu0 0.0
    %1101 = vmatprep.subr.mxu0 %v1070
    %1102 = vmatpush1.msra.mxu0 %v1069
    %1103 = vmatprep.subr.mxu0 %v1066
    %1104 = vmatpush1.msra.mxu0 %v1065
    %1105 = vmatprep.subr.mxu0 0.0
    %1106 = vmatpush2.msra.mxu0 0.0
    %1107 = vmatprep.subr.mxu0 0.0
    %1108 = vmatpush2.msra.mxu0 0.0
    %1109 = vmatprep.subr.mxu0 0.0
    %1110 = vmatpush2.msra.mxu0 0.0
    %1111 = vmatprep.subr.mxu0 0.0
    %1112 = vmatpush2.msra.mxu0 0.0
    %1113 = vmatprep.subr.mxu0 0.0
    %1114 = vmatpush2.msra.mxu0 0.0
    %1115 = vmatprep.subr.mxu0 0.0
    %1116 = vmatpush2.msra.mxu0 0.0
    %1117 = vmatprep.subr.mxu0 0.0
    %1118 = vmatpush2.msra.mxu0 0.0
    %1119 = vmatprep.subr.mxu0 0.0
    %1120 = vmatpush2.msra.mxu0 0.0
    %1121 = vmatprep.subr.mxu0 0.0
    %1122 = vmatpush2.msra.mxu0 0.0
    %1123 = vmatprep.subr.mxu0 0.0
    %1124 = vmatpush2.msra.mxu0 0.0
    %1125 = vmatprep.subr.mxu0 0.0
    %1126 = vmatpush2.msra.mxu0 0.0
    %1127 = vmatprep.subr.mxu0 0.0
    %1128 = vmatpush2.msra.mxu0 0.0
    %1129 = vmatprep.subr.mxu0 0.0
    %1130 = vmatpush2.msra.mxu0 0.0
    %1131 = vmatprep.subr.mxu0 0.0
    %1132 = vmatpush2.msra.mxu0 0.0
    %1133 = vmatprep.subr.mxu0 0.0
    %1134 = vmatpush2.msra.mxu0 0.0
    %1135 = vmatprep.subr.mxu0 0.0
    %1136 = vmatpush2.msra.mxu0 0.0
    %1137 = vmatprep.mubr.f32.mxu0 0.0
    %1138 = vmatmul.mubr.f32.gmra.mxu0 %v52
    %v1139 = vpop.f32.mrf.mxu0
    %v1140 = vadd.f32 0.0, %v1139
    %v1141 = vpop.f32.mrf.mxu0
    %v1142 = vadd.f32 0.0, %v1141
    %1143 = vmatprep.mubr.f32.mxu0 0.0
    %1144 = vmatmul.mubr.f32.gmra.mxu0 %v55
    %v1145 = vpop.f32.mrf.mxu0
    %v1146 = vadd.f32 0.0, %v1145
    %v1147 = vpop.f32.mrf.mxu0
    %v1148 = vadd.f32 0.0, %v1147
    %1149 = vdwg.mxu0
    %1150 = vmatprep.subr.mxu0 0.0
    %1151 = vmatpush1.msra.mxu0 0.0
    %1152 = vmatprep.subr.mxu0 0.0
    %1153 = vmatpush1.msra.mxu0 0.0
    %1154 = vmatprep.subr.mxu0 0.0
    %1155 = vmatpush1.msra.mxu0 0.0
    %1156 = vmatprep.subr.mxu0 0.0
    %1157 = vmatpush1.msra.mxu0 0.0
    %1158 = vmatprep.subr.mxu0 0.0
    %1159 = vmatpush1.msra.mxu0 0.0
    %1160 = vmatprep.subr.mxu0 0.0
    %1161 = vmatpush1.msra.mxu0 0.0
    %1162 = vmatprep.subr.mxu0 0.0
    %1163 = vmatpush1.msra.mxu0 0.0
    %1164 = vmatprep.subr.mxu0 0.0
    %1165 = vmatpush1.msra.mxu0 0.0
    %1166 = vmatprep.subr.mxu0 0.0
    %1167 = vmatpush1.msra.mxu0 0.0
    %1168 = vmatprep.subr.mxu0 0.0
    %1169 = vmatpush1.msra.mxu0 0.0
    %1170 = vmatprep.subr.mxu0 0.0
    %1171 = vmatpush1.msra.mxu0 0.0
    %1172 = vmatprep.subr.mxu0 0.0
    %1173 = vmatpush1.msra.mxu0 0.0
    %1174 = vmatprep.subr.mxu0 0.0
    %1175 = vmatpush1.msra.mxu0 0.0
    %1176 = vmatprep.subr.mxu0 0.0
    %1177 = vmatpush1.msra.mxu0 0.0
    %1178 = vmatprep.subr.mxu0 %v1072
    %1179 = vmatpush1.msra.mxu0 %v1071
    %1180 = vmatprep.subr.mxu0 %v1068
    %1181 = vmatpush1.msra.mxu0 %v1067
    %1182 = vmatprep.subr.mxu0 0.0
    %1183 = vmatpush2.msra.mxu0 0.0
    %1184 = vmatprep.subr.mxu0 0.0
    %1185 = vmatpush2.msra.mxu0 0.0
    %1186 = vmatprep.subr.mxu0 0.0
    %1187 = vmatpush2.msra.mxu0 0.0
    %1188 = vmatprep.subr.mxu0 0.0
    %1189 = vmatpush2.msra.mxu0 0.0
    %1190 = vmatprep.subr.mxu0 0.0
    %1191 = vmatpush2.msra.mxu0 0.0
    %1192 = vmatprep.subr.mxu0 0.0
    %1193 = vmatpush2.msra.mxu0 0.0
    %1194 = vmatprep.subr.mxu0 0.0
    %1195 = vmatpush2.msra.mxu0 0.0
    %1196 = vmatprep.subr.mxu0 0.0
    %1197 = vmatpush2.msra.mxu0 0.0
    %1198 = vmatprep.subr.mxu0 0.0
    %1199 = vmatpush2.msra.mxu0 0.0
    %1200 = vmatprep.subr.mxu0 0.0
    %1201 = vmatpush2.msra.mxu0 0.0
    %1202 = vmatprep.subr.mxu0 0.0
    %1203 = vmatpush2.msra.mxu0 0.0
    %1204 = vmatprep.subr.mxu0 0.0
    %1205 = vmatpush2.msra.mxu0 0.0
    %1206 = vmatprep.subr.mxu0 0.0
    %1207 = vmatpush2.msra.mxu0 0.0
    %1208 = vmatprep.subr.mxu0 0.0
    %1209 = vmatpush2.msra.mxu0 0.0
    %1210 = vmatprep.subr.mxu0 0.0
    %1211 = vmatpush2.msra.mxu0 0.0
    %1212 = vmatprep.subr.mxu0 0.0
    %1213 = vmatpush2.msra.mxu0 0.0
    %1214 = vmatprep.mubr.f32.mxu0 0.0
    %1215 = vmatmul.mubr.f32.gmra.mxu0 %v52
    %v1216 = vpop.f32.mrf.mxu0
    %v1217 = vadd.f32 0.0, %v1216
    %v1218 = vpop.f32.mrf.mxu0
    %v1219 = vadd.f32 0.0, %v1218
    %1220 = vmatprep.mubr.f32.mxu0 0.0
    %1221 = vmatmul.mubr.f32.gmra.mxu0 %v55
    %v1222 = vpop.f32.mrf.mxu0
    %v1223 = vadd.f32 0.0, %v1222
    %v1224 = vpop.f32.mrf.mxu0
    %v1225 = vadd.f32 0.0, %v1224
    %1226 = vdwg.mxu0
    %v1227 = vmul.f32 %v1140, %v1217
    %v1228 = vmul.f32 %v1142, %v1219
    %v1229 = vmul.f32 %v1146, %v1223
    %v1230 = vmul.f32 %v1148, %v1225
    %v1231 = vadd.f32 %v1061, %v1227
    %v1232 = vadd.f32 %v1062, %v1228
    %v1233 = vadd.f32 %v1063, %v1229
    %v1234 = vadd.f32 %v1064, %v1230
    %v1235 = vld [vmem:[#allocation5 + $0xe0] sm:$0xff]
    %v1236 = vld [vmem:[#allocation5 + $0xe8] sm:$0xff]
    %v1237 = vld [vmem:[#allocation5 + $0xf0] sm:$0xff]
    %v1238 = vld [vmem:[#allocation5 + $0xf8] sm:$0xff]
    %v1239 = vld [vmem:[#allocation5 + $0x1e0] sm:$0xff]
    %v1240 = vld [vmem:[#allocation5 + $0x1e8] sm:$0xff]
    %v1241 = vld [vmem:[#allocation5 + $0x1f0] sm:$0xff]
    %v1242 = vld [vmem:[#allocation5 + $0x1f8] sm:$0xff]
    %1243 = vmatprep.subr.mxu0 0.0
    %1244 = vmatpush1.msra.mxu0 0.0
    %1245 = vmatprep.subr.mxu0 0.0
    %1246 = vmatpush1.msra.mxu0 0.0
    %1247 = vmatprep.subr.mxu0 0.0
    %1248 = vmatpush1.msra.mxu0 0.0
    %1249 = vmatprep.subr.mxu0 0.0
    %1250 = vmatpush1.msra.mxu0 0.0
    %1251 = vmatprep.subr.mxu0 0.0
    %1252 = vmatpush1.msra.mxu0 0.0
    %1253 = vmatprep.subr.mxu0 0.0
    %1254 = vmatpush1.msra.mxu0 0.0
    %1255 = vmatprep.subr.mxu0 0.0
    %1256 = vmatpush1.msra.mxu0 0.0
    %1257 = vmatprep.subr.mxu0 0.0
    %1258 = vmatpush1.msra.mxu0 0.0
    %1259 = vmatprep.subr.mxu0 0.0
    %1260 = vmatpush1.msra.mxu0 0.0
    %1261 = vmatprep.subr.mxu0 0.0
    %1262 = vmatpush1.msra.mxu0 0.0
    %1263 = vmatprep.subr.mxu0 0.0
    %1264 = vmatpush1.msra.mxu0 0.0
    %1265 = vmatprep.subr.mxu0 0.0
    %1266 = vmatpush1.msra.mxu0 0.0
    %1267 = vmatprep.subr.mxu0 0.0
    %1268 = vmatpush1.msra.mxu0 0.0
    %1269 = vmatprep.subr.mxu0 0.0
    %1270 = vmatpush1.msra.mxu0 0.0
    %1271 = vmatprep.subr.mxu0 %v1240
    %1272 = vmatpush1.msra.mxu0 %v1239
    %1273 = vmatprep.subr.mxu0 %v1236
    %1274 = vmatpush1.msra.mxu0 %v1235
    %1275 = vmatprep.subr.mxu0 0.0
    %1276 = vmatpush2.msra.mxu0 0.0
    %1277 = vmatprep.subr.mxu0 0.0
    %1278 = vmatpush2.msra.mxu0 0.0
    %1279 = vmatprep.subr.mxu0 0.0
    %1280 = vmatpush2.msra.mxu0 0.0
    %1281 = vmatprep.subr.mxu0 0.0
    %1282 = vmatpush2.msra.mxu0 0.0
    %1283 = vmatprep.subr.mxu0 0.0
    %1284 = vmatpush2.msra.mxu0 0.0
    %1285 = vmatprep.subr.mxu0 0.0
    %1286 = vmatpush2.msra.mxu0 0.0
    %1287 = vmatprep.subr.mxu0 0.0
    %1288 = vmatpush2.msra.mxu0 0.0
    %1289 = vmatprep.subr.mxu0 0.0
    %1290 = vmatpush2.msra.mxu0 0.0
    %1291 = vmatprep.subr.mxu0 0.0
    %1292 = vmatpush2.msra.mxu0 0.0
    %1293 = vmatprep.subr.mxu0 0.0
    %1294 = vmatpush2.msra.mxu0 0.0
    %1295 = vmatprep.subr.mxu0 0.0
    %1296 = vmatpush2.msra.mxu0 0.0
    %1297 = vmatprep.subr.mxu0 0.0
    %1298 = vmatpush2.msra.mxu0 0.0
    %1299 = vmatprep.subr.mxu0 0.0
    %1300 = vmatpush2.msra.mxu0 0.0
    %1301 = vmatprep.subr.mxu0 0.0
    %1302 = vmatpush2.msra.mxu0 0.0
    %1303 = vmatprep.subr.mxu0 0.0
    %1304 = vmatpush2.msra.mxu0 0.0
    %1305 = vmatprep.subr.mxu0 0.0
    %1306 = vmatpush2.msra.mxu0 0.0
    %1307 = vmatprep.mubr.f32.mxu0 0.0
    %1308 = vmatmul.mubr.f32.gmra.mxu0 %v52
    %v1309 = vpop.f32.mrf.mxu0
    %v1310 = vadd.f32 0.0, %v1309
    %v1311 = vpop.f32.mrf.mxu0
    %v1312 = vadd.f32 0.0, %v1311
    %1313 = vmatprep.mubr.f32.mxu0 0.0
    %1314 = vmatmul.mubr.f32.gmra.mxu0 %v55
    %v1315 = vpop.f32.mrf.mxu0
    %v1316 = vadd.f32 0.0, %v1315
    %v1317 = vpop.f32.mrf.mxu0
    %v1318 = vadd.f32 0.0, %v1317
    %1319 = vdwg.mxu0
    %1320 = vmatprep.subr.mxu0 0.0
    %1321 = vmatpush1.msra.mxu0 0.0
    %1322 = vmatprep.subr.mxu0 0.0
    %1323 = vmatpush1.msra.mxu0 0.0
    %1324 = vmatprep.subr.mxu0 0.0
    %1325 = vmatpush1.msra.mxu0 0.0
    %1326 = vmatprep.subr.mxu0 0.0
    %1327 = vmatpush1.msra.mxu0 0.0
    %1328 = vmatprep.subr.mxu0 0.0
    %1329 = vmatpush1.msra.mxu0 0.0
    %1330 = vmatprep.subr.mxu0 0.0
    %1331 = vmatpush1.msra.mxu0 0.0
    %1332 = vmatprep.subr.mxu0 0.0
    %1333 = vmatpush1.msra.mxu0 0.0
    %1334 = vmatprep.subr.mxu0 0.0
    %1335 = vmatpush1.msra.mxu0 0.0
    %1336 = vmatprep.subr.mxu0 0.0
    %1337 = vmatpush1.msra.mxu0 0.0
    %1338 = vmatprep.subr.mxu0 0.0
    %1339 = vmatpush1.msra.mxu0 0.0
    %1340 = vmatprep.subr.mxu0 0.0
    %1341 = vmatpush1.msra.mxu0 0.0
    %1342 = vmatprep.subr.mxu0 0.0
    %1343 = vmatpush1.msra.mxu0 0.0
    %1344 = vmatprep.subr.mxu0 0.0
    %1345 = vmatpush1.msra.mxu0 0.0
    %1346 = vmatprep.subr.mxu0 0.0
    %1347 = vmatpush1.msra.mxu0 0.0
    %1348 = vmatprep.subr.mxu0 %v1242
    %1349 = vmatpush1.msra.mxu0 %v1241
    %1350 = vmatprep.subr.mxu0 %v1238
    %1351 = vmatpush1.msra.mxu0 %v1237
    %1352 = vmatprep.subr.mxu0 0.0
    %1353 = vmatpush2.msra.mxu0 0.0
    %1354 = vmatprep.subr.mxu0 0.0
    %1355 = vmatpush2.msra.mxu0 0.0
    %1356 = vmatprep.subr.mxu0 0.0
    %1357 = vmatpush2.msra.mxu0 0.0
    %1358 = vmatprep.subr.mxu0 0.0
    %1359 = vmatpush2.msra.mxu0 0.0
    %1360 = vmatprep.subr.mxu0 0.0
    %1361 = vmatpush2.msra.mxu0 0.0
    %1362 = vmatprep.subr.mxu0 0.0
    %1363 = vmatpush2.msra.mxu0 0.0
    %1364 = vmatprep.subr.mxu0 0.0
    %1365 = vmatpush2.msra.mxu0 0.0
    %1366 = vmatprep.subr.mxu0 0.0
    %1367 = vmatpush2.msra.mxu0 0.0
    %1368 = vmatprep.subr.mxu0 0.0
    %1369 = vmatpush2.msra.mxu0 0.0
    %1370 = vmatprep.subr.mxu0 0.0
    %1371 = vmatpush2.msra.mxu0 0.0
    %1372 = vmatprep.subr.mxu0 0.0
    %1373 = vmatpush2.msra.mxu0 0.0
    %1374 = vmatprep.subr.mxu0 0.0
    %1375 = vmatpush2.msra.mxu0 0.0
    %1376 = vmatprep.subr.mxu0 0.0
    %1377 = vmatpush2.msra.mxu0 0.0
    %1378 = vmatprep.subr.mxu0 0.0
    %1379 = vmatpush2.msra.mxu0 0.0
    %1380 = vmatprep.subr.mxu0 0.0
    %1381 = vmatpush2.msra.mxu0 0.0
    %1382 = vmatprep.subr.mxu0 0.0
    %1383 = vmatpush2.msra.mxu0 0.0
    %1384 = vmatprep.mubr.f32.mxu0 0.0
    %1385 = vmatmul.mubr.f32.gmra.mxu0 %v52
    %v1386 = vpop.f32.mrf.mxu0
    %v1387 = vadd.f32 0.0, %v1386
    %v1388 = vpop.f32.mrf.mxu0
    %v1389 = vadd.f32 0.0, %v1388
    %1390 = vmatprep.mubr.f32.mxu0 0.0
    %1391 = vmatmul.mubr.f32.gmra.mxu0 %v55
    %v1392 = vpop.f32.mrf.mxu0
    %v1393 = vadd.f32 0.0, %v1392
    %v1394 = vpop.f32.mrf.mxu0
    %v1395 = vadd.f32 0.0, %v1394
    %1396 = vdwg.mxu0
    %v1397 = vmul.f32 %v1310, %v1387
    %v1398 = vmul.f32 %v1312, %v1389
    %v1399 = vmul.f32 %v1316, %v1393
    %v1400 = vmul.f32 %v1318, %v1395
    %v1401 = vadd.f32 %v1231, %v1397
    %v1402 = vadd.f32 %v1232, %v1398
    %v1403 = vadd.f32 %v1233, %v1399
    %v1404 = vadd.f32 %v1234, %v1400
    %1405 = vst [vmem:[#allocation7] sm:$0xff] %v1401
    %1406 = vst [vmem:[#allocation7 + $0x8] sm:$0xff] %v1402
    %1407 = vst [vmem:[#allocation7 + $0x10] sm:$0xff] %v1403
    %1408 = vst [vmem:[#allocation7 + $0x18] sm:$0xff] %v1404
    // Predicated region
    $region18: #{tpu_custom_call.1} parent=1 // pred_check
      _
    $region19: #{tpu_custom_call.1} parent=1 // pred_check_branch
      %1410 = sbr.rel (0) target = $region21
    $region20: #{tpu_custom_call.1} parent=1 // pred_region
      %s1412 = ssub.s32 512, 512
      %1413 = vsyncadd [#allocation4], %s1412
      %s1414 = sshll.u32 [#allocation7], 4
      %s1415 = int_to_ptr.vmem [resolvable:$true] %s1414
      %1420 = dma.vmem_to_hbm [thread:$0]  %s1415, 512, %s2, [#allocation4], 256, 256, 16
    $region21: #{tpu_custom_call.1} parent=1 // pred_fallthru
      _
    // Predicated region
    $region22: #{tpu_custom_call.1} parent=1 // pred_check
      _
    $region23: #{tpu_custom_call.1} parent=1 // pred_check_branch
      %1422 = sbr.rel (0) target = $region25
    $region24: #{tpu_custom_call.1} parent=1 // pred_region
      %1423 = dma.done [#allocation4], 512
    $region25: #{tpu_custom_call.1} parent=1 // pred_fallthru
      _
    %1424 = vsyncpa [#allocation3], 1
    %1425 = vsyncpa [#allocation6], 1
    %1426 = vsyncpa [#allocation4], 1

</llo_original>
